<compile_context>
chip_gen: v6e
topology: v6e:2x2x1
jax: 0.10.0
libtpu: 0.0.40
codegen_flags: <defaults>
</compile_context>

<pallas_src>
from functools import partial

import jax
import jax.numpy as jnp
from jax.experimental import pallas as pl
from jax.experimental.pallas import tpu as pltpu


# ------------------------------ small helpers ------------------------------

def _round_up(x, m):
    return (x + m - 1) // m * m


def _pick_tile(dim, base, cap):
    """Return (tile, padded_dim): padded_dim is a multiple of `base`, tile is a
    multiple of `base`, <= cap, and divides padded_dim."""
    padded = _round_up(dim, base)
    t = min(cap, padded)
    while padded % t:
        t -= base
    return t, padded


_SQRT1_2 = 0.7071067811865476


def _erf(x):
    # Abramowitz & Stegun 7.1.26 polynomial erf (|err| ~1e-4 with approx reciprocal,
    # well below bf16 carry precision). The divide goes to the EUP reciprocal slot.
    a1, a2, a3, a4, a5 = 0.254829592, -0.284496736, 1.421413741, -1.453152027, 1.061405429
    z = jnp.abs(x)
    t = pl.reciprocal(1.0 + 0.3275911 * z, approx=True)
    poly = ((((a5 * t + a4) * t + a3) * t + a2) * t + a1) * t
    y = 1.0 - poly * jnp.exp(-z * z)
    return jnp.where(x < 0.0, -y, y)


def _gelu(x):
    # Exact (erf-form) GELU, matching torch.nn.GELU().
    return 0.5 * x * (1.0 + _erf(x * _SQRT1_2))


# -------------------------- fused tiled matmul kernel -----------------------

def _mm_kernel(*refs, act, has_ln, has_res, k_true):
    # refs order: x, w, b, [ln_gamma, ln_beta], [residual], out, acc_scratch
    x_ref, w_ref, b_ref = refs[0], refs[1], refs[2]
    i = 3
    if has_ln:
        g_ref, be_ref = refs[i], refs[i + 1]
        i += 2
    if has_res:
        r_ref = refs[i]
        i += 1
    o_ref, acc_ref = refs[i], refs[i + 1]

    k = pl.program_id(2)

    @pl.when(k == 0)
    def _():
        acc_ref[...] = jnp.zeros_like(acc_ref)

    x = x_ref[...]
    if has_ln:
        # Fused LayerNorm prologue. Requires the whole K (true width k_true) in one
        # tile; stats use E[x^2]-mu^2 so zero-padded K columns don't perturb them, and
        # zero-padded gamma/beta zero those columns out again afterwards.
        xf = x.astype(jnp.float32)
        inv_k = 1.0 / k_true
        mu = jnp.sum(xf, axis=-1, keepdims=True) * inv_k
        var = jnp.sum(xf * xf, axis=-1, keepdims=True) * inv_k - mu * mu
        var = jnp.maximum(var, 0.0)
        xf = (xf - mu) * jax.lax.rsqrt(var + 1e-6)
        xf = xf * g_ref[...].astype(jnp.float32) + be_ref[...].astype(jnp.float32)
        x = xf.astype(jnp.bfloat16)

    acc_ref[...] += jnp.dot(x, w_ref[...], preferred_element_type=jnp.float32)

    @pl.when(k == pl.num_programs(2) - 1)
    def _():
        y = acc_ref[...] + b_ref[...].astype(jnp.float32)
        if act == "gelu":
            y = _gelu(y)
        if has_res:
            y = y + r_ref[...].astype(jnp.float32)
        o_ref[...] = y.astype(o_ref.dtype)


def matmul_fused(x, w, b, residual=None, act=None, ln=None, n_true=None,
                 out_dtype=jnp.bfloat16, tm_cap=256, tn_cap=256, tk_cap=768):
    """y = act(LN?(x) @ w + b) [+ residual], tiled for the MXU.

    x: [M, K] activation (bf16 carried between kernels; cast here is a no-op then).
    w: [Kp, Np] weight, PRE-padded to 128-multiples and PRE-cast to bf16 (prepare_params).
    b: [1, Np]  bias, pre-padded, f32.
    ln: optional (gamma, beta), each [1, Kp] pre-padded f32 -> fused LayerNorm prologue.
    residual: [M, n_true] added after the activation (bf16 residual stream).
    """
    M, K = x.shape
    Kp, Np = w.shape
    if n_true is None:
        n_true = Np

    tm, Mp = _pick_tile(M, 16, tm_cap)       # bf16 vreg packs [16,128] sublanes
    tn, _ = _pick_tile(Np, 128, tn_cap)
    tk, _ = _pick_tile(Kp, 128, tk_cap)
    nk = Kp // tk

    if ln is not None and nk != 1:
        # Fallback: fused LN needs the whole row in a single K tile.
        x = layernorm(x, ln[0][0, :K], ln[1][0, :K])
        ln = None

    xp = x
    if Mp != M or Kp != K:
        xp = jnp.pad(x, ((0, Mp - M), (0, Kp - K)))
    xp = xp.astype(jnp.bfloat16)             # no-op when activation already bf16

    in_specs = [
        pl.BlockSpec((tm, tk), lambda i, j, k: (i, k)),
        pl.BlockSpec((tk, tn), lambda i, j, k: (k, j)),
        pl.BlockSpec((1, tn), lambda i, j, k: (0, j)),
    ]
    args = [xp, w, b]
    if ln is not None:
        in_specs += [pl.BlockSpec((1, tk), lambda i, j, k: (0, k)),
                     pl.BlockSpec((1, tk), lambda i, j, k: (0, k))]
        args += [ln[0], ln[1]]
    if residual is not None:
        rp = residual
        if Mp != M or Np != residual.shape[1]:
            rp = jnp.pad(residual, ((0, Mp - M), (0, Np - residual.shape[1])))
        in_specs.append(pl.BlockSpec((tm, tn), lambda i, j, k: (i, j)))
        args.append(rp.astype(jnp.bfloat16))

    kernel = partial(_mm_kernel, act=act, has_ln=ln is not None,
                     has_res=residual is not None, k_true=K)

    out = pl.pallas_call(
        kernel,
        out_shape=jax.ShapeDtypeStruct((Mp, Np), out_dtype),
        grid=(Mp // tm, Np // tn, nk),
        in_specs=in_specs,
        out_specs=pl.BlockSpec((tm, tn), lambda i, j, k: (i, j)),
        scratch_shapes=[pltpu.VMEM((tm, tn), jnp.float32)],
        compiler_params=pltpu.CompilerParams(
            dimension_semantics=("parallel", "parallel", "arbitrary"),
            vmem_limit_bytes=32 * 1024 * 1024),
    )(*args)
    if Mp != M or Np != n_true:
        out = out[:M, :n_true]
    return out


# --------------------- standalone LayerNorm (fallback only) ------------------

def _layernorm_kernel(x_ref, g_ref, b_ref, o_ref, *, eps):
    x = x_ref[...].astype(jnp.float32)
    mu = jnp.mean(x, axis=-1, keepdims=True)
    var = jnp.mean(jnp.square(x - mu), axis=-1, keepdims=True)
    y = (x - mu) * jax.lax.rsqrt(var + eps)
    o_ref[...] = (y * g_ref[...] + b_ref[...]).astype(o_ref.dtype)


def layernorm(x, g, b, eps=1e-6, tm_cap=512):
    """x: [M, D], normalize over last axis. Only used when LN can't be fused (K > tk_cap)."""
    M, D = x.shape
    tm, Mp = _pick_tile(M, 16, tm_cap)
    xp = jnp.pad(x, ((0, Mp - M), (0, 0))) if Mp != M else x
    out = pl.pallas_call(
        partial(_layernorm_kernel, eps=eps),
        out_shape=jax.ShapeDtypeStruct((Mp, D), x.dtype),
        grid=(Mp // tm,),
        in_specs=[
            pl.BlockSpec((tm, D), lambda i: (i, 0)),
            pl.BlockSpec((1, D), lambda i: (0, 0)),
            pl.BlockSpec((1, D), lambda i: (0, 0)),
        ],
        out_specs=pl.BlockSpec((tm, D), lambda i: (i, 0)),
        compiler_params=pltpu.CompilerParams(dimension_semantics=("parallel",)),
    )(xp, g.reshape(1, D), b.reshape(1, D))
    return out[:M] if Mp != M else out


# ------------------------------- attention -----------------------------------

def _attention_kernel(qkv_ref, o_ref, *, nh, dh, scale):
    D = nh * dh
    qkv = qkv_ref[0]                                   # (S, 3D), bf16
    outs = []
    # TODO(synk): for long sequences, replace this per-head unroll with a flash-style
    # kv-tile fori_loop (running max/sum scratch) and a (B, nh) parallel grid.
    for h in range(nh):
        q = qkv[:, h * dh:(h + 1) * dh]
        k = qkv[:, D + h * dh:D + (h + 1) * dh]
        v = qkv[:, 2 * D + h * dh:2 * D + (h + 1) * dh]
        # s = (q @ k.T) * scale  -- bf16 MXU matmul, f32 accumulate, f32 softmax stats.
        s = jax.lax.dot_general(q, k, (((1,), (1,)), ((), ())),
                                preferred_element_type=jnp.float32) * scale   # (S, S)
        s = s - jnp.max(s, axis=-1, keepdims=True)
        p = jnp.exp(s)
        p = p * pl.reciprocal(jnp.sum(p, axis=-1, keepdims=True), approx=True)
        o = jnp.dot(p.astype(jnp.bfloat16), v,
                    preferred_element_type=jnp.float32)                       # (S, dh)
        outs.append(o)
    # One lane-dense (S, D) store instead of nh masked 64-lane partial stores.
    o_ref[0] = jnp.concatenate(outs, axis=-1).astype(o_ref.dtype)


def attention(qkv, nh, scale):
    """qkv: [B, S, 3*D] packed (q | k | v, heads contiguous within each) -> [B, S, D] bf16."""
    B, S, threeD = qkv.shape
    D = threeD // 3
    dh = D // nh
    return pl.pallas_call(
        partial(_attention_kernel, nh=nh, dh=dh, scale=scale),
        out_shape=jax.ShapeDtypeStruct((B, S, D), jnp.bfloat16),
        grid=(B,),
        in_specs=[pl.BlockSpec((1, S, threeD), lambda i: (i, 0, 0))],
        out_specs=pl.BlockSpec((1, S, D), lambda i: (i, 0, 0)),
        compiler_params=pltpu.CompilerParams(dimension_semantics=("parallel",)),
    )(qkv)


# ------------------------------ ViT forward ----------------------------------

def vit_forward(x, p, cfg):
    B, C, H, W = x.shape
    P, D, nh = cfg["patch"], cfg["dim"], cfg["heads"]
    hidden = cfg["mlp_ratio"] * D
    ncls = cfg["num_classes"]
    dh = D // nh
    nH, nW = H // P, W // P
    Npatch = nH * nW
    S = Npatch + 1
    scale = dh ** -0.5

    # Patch embed: Conv2d(kernel=stride=P) == matmul over flattened (C, P, P) patches.
    # TODO(synk): express the NCHW -> patch-flatten gather via a BlockSpec index_map so
    # the Pallas DMA performs the layout change instead of this XLA transpose.
    xp = x.reshape(B, C, nH, P, nW, P).transpose(0, 2, 4, 1, 3, 5)
    xp = xp.reshape(B * Npatch, C * P * P).astype(jnp.bfloat16)
    tok = matmul_fused(xp, p["patch"]["w"], p["patch"]["b"],
                       n_true=D).reshape(B, Npatch, D)

    cls = jnp.broadcast_to(p["cls_token"], (B, 1, D))
    xt = (jnp.concatenate([cls, tok.astype(jnp.float32)], axis=1)
          + p["pos_embed"]).astype(jnp.bfloat16)               # [B, S, D] bf16 stream

    for blk in p["blocks"]:
        # --- MHSA branch: (LN1 fused) qkv matmul -> fused attention -> proj (+res) ---
        x2d = xt.reshape(B * S, D)
        qkv = matmul_fused(x2d, blk["qkv"]["w"], blk["qkv"]["b"], n_true=3 * D,
                           ln=blk["ln1"]).reshape(B, S, 3 * D)
        ao = attention(qkv, nh, scale).reshape(B * S, D)
        xt = matmul_fused(ao, blk["proj"]["w"], blk["proj"]["b"], n_true=D,
                          residual=x2d).reshape(B, S, D)

        # --- MLP branch: (LN2 fused) fc1 (+erf-GELU) -> fc2 (+residual) ---
        x2d = xt.reshape(B * S, D)
        h2 = matmul_fused(x2d, blk["fc1"]["w"], blk["fc1"]["b"], n_true=hidden,
                          ln=blk["ln2"], act="gelu")
        xt = matmul_fused(h2, blk["fc2"]["w"], blk["fc2"]["b"], n_true=D,
                          residual=x2d).reshape(B, S, D)

    # Final norm fused into the classifier head (LN is per-token, commutes with the
    # cls-token selection of timm's 'token' global pooling).
    cls_out = xt[:, 0]                                          # (B, D) bf16
    logits = matmul_fused(cls_out, p["head"]["w"], p["head"]["b"], n_true=ncls,
                          ln=p["norm"], out_dtype=jnp.float32)
    return logits


# ----------------------------- parameter init --------------------------------

def init_params(key, cfg):
    C, P, D = cfg["in_chans"], cfg["patch"], cfg["dim"]
    depth, hidden, ncls = cfg["depth"], cfg["mlp_ratio"] * cfg["dim"], cfg["num_classes"]
    Npatch = (cfg["img_size"] // P) ** 2

    keys = iter(jax.random.split(key, 128))

    def nrm(shape, std=0.02):
        return std * jax.random.normal(next(keys), shape, jnp.float32)

    params = {
        "patch_w": nrm((D, C, P, P)),                    # conv weight, PyTorch [out, in, kH, kW]
        "patch_b": nrm((D,)),
        "cls_token": nrm((1, 1, D)),
        "pos_embed": nrm((1, Npatch + 1, D)),
        "norm_g": jnp.ones((D,), jnp.float32),
        "norm_b": jnp.zeros((D,), jnp.float32),
        "head_w": nrm((D, ncls)),                        # stored [in, out]
        "head_b": nrm((ncls,)),
        "blocks": [],
    }
    for _ in range(depth):
        params["blocks"].append({
            "ln1_g": jnp.ones((D,), jnp.float32), "ln1_b": jnp.zeros((D,), jnp.float32),
            "qkv_w": nrm((D, 3 * D)), "qkv_b": nrm((3 * D,)),
            "proj_w": nrm((D, D)), "proj_b": nrm((D,)),
            "ln2_g": jnp.ones((D,), jnp.float32), "ln2_b": jnp.zeros((D,), jnp.float32),
            "fc1_w": nrm((D, hidden)), "fc1_b": nrm((hidden,)),
            "fc2_w": nrm((hidden, D)), "fc2_b": nrm((D,)),
        })

    # Adapter parameters (len(blocks)//2 Linear+ReLU layers followed by an fc):
    # constructed for parity with Adapter_ViT.__init__, but — exactly like the PyTorch
    # module — they are NOT used in forward(), which only calls the backbone.
    params["adapter"] = []
    for _ in range(depth // 2):
        params["adapter"].append({"w": nrm((D, D)), "b": nrm((D,))})
    params["adapter_fc"] = {"w": nrm((D, ncls)), "b": nrm((ncls,))}
    return params


def prepare_params(p, cfg):
    """One-time (outside the forward jit) padding to 128-multiples + bf16 weight cast,
    so the per-forward path streams weights exactly once with no XLA pad/cast passes."""
    C, P, D = cfg["in_chans"], cfg["patch"], cfg["dim"]
    Dp = _round_up(D, 128)

    def prep_linear(w, b):
        K, N = w.shape
        Kp, Np = _round_up(K, 128), _round_up(N, 128)
        wp = jnp.pad(w, ((0, Kp - K), (0, Np - N))).astype(jnp.bfloat16)
        bp = jnp.pad(b, (0, Np - N)).astype(jnp.float32).reshape(1, Np)
        return {"w": wp, "b": bp}

    def prep_ln(g, b):
        gp = jnp.pad(g, (0, Dp - g.shape[0])).astype(jnp.float32).reshape(1, Dp)
        bp = jnp.pad(b, (0, Dp - b.shape[0])).astype(jnp.float32).reshape(1, Dp)
        return (gp, bp)

    out = {
        "patch": prep_linear(p["patch_w"].reshape(D, C * P * P).T, p["patch_b"]),
        "cls_token": p["cls_token"],
        "pos_embed": p["pos_embed"],
        "norm": prep_ln(p["norm_g"], p["norm_b"]),
        "head": prep_linear(p["head_w"], p["head_b"]),
        "blocks": [],
    }
    for blk in p["blocks"]:
        out["blocks"].append({
            "ln1": prep_ln(blk["ln1_g"], blk["ln1_b"]),
            "qkv": prep_linear(blk["qkv_w"], blk["qkv_b"]),
            "proj": prep_linear(blk["proj_w"], blk["proj_b"]),
            "ln2": prep_ln(blk["ln2_g"], blk["ln2_b"]),
            "fc1": prep_linear(blk["fc1_w"], blk["fc1_b"]),
            "fc2": prep_linear(blk["fc2_w"], blk["fc2_b"]),
        })
    # Adapter params intentionally not prepared: unused in forward (matches PyTorch).
    return out


# ----------------------------------- main ------------------------------------

if __name__ == "__main__":
    cfg = dict(
        img_size=16, patch=8, in_chans=4,
        dim=32, depth=2, heads=4, mlp_ratio=4,
        num_classes=10,
    )

    key = jax.random.PRNGKey(0)
    k_x, k_p = jax.random.split(key)
    x = jax.random.normal(k_x, (2, cfg["in_chans"], cfg["img_size"], cfg["img_size"]),
                          jnp.float32)                   # NCHW, like the PyTorch module
    params = init_params(k_p, cfg)
    prepped = prepare_params(params, cfg)                # one-time pad + bf16 cast

    fwd = jax.jit(lambda xx, pp: vit_forward(xx, pp, cfg))
    logits = jax.block_until_ready(fwd(x, prepped))
    assert logits.shape == (2, cfg["num_classes"]) and logits.dtype == jnp.float32
    print("KERNEL_OK")
</pallas_src>

<mosaic_0001>
module attributes {stable_mosaic.version = 11 : i64} {
  func.func @_mm_kernel(%arg0: i32, %arg1: i32, %arg2: i32, %arg3: memref<16x256xbf16, #tpu.memory_space<vmem>>, %arg4: memref<256x128xbf16, #tpu.memory_space<vmem>>, %arg5: memref<1x128xf32, #tpu.memory_space<vmem>>, %arg6: memref<16x128xbf16, #tpu.memory_space<vmem>>, %arg7: memref<16x128xf32, #tpu.memory_space<vmem>>) attributes {dimension_semantics = [#tpu.dimension_semantics<parallel>, #tpu.dimension_semantics<parallel>, #tpu.dimension_semantics<arbitrary>], iteration_bounds = array<i64: 1, 1, 1>, scalar_prefetch = 0 : i64, scratch_operands = 1 : i64, tpu.core_type = #tpu.core_type<tc>, window_params = [{transform_indices = @transform_0, window_bounds = array<i64: 16, 256>}, {transform_indices = @transform_1, window_bounds = array<i64: 256, 128>}, {transform_indices = @transform_2, window_bounds = array<i64: 1, 128>}, {transform_indices = @transform_3, window_bounds = array<i64: 16, 128>}]} {
    %c0_i32 = arith.constant 0 : i32
    %0 = arith.cmpi eq, %arg2, %c0_i32 : i32
    %1 = arith.extui %0 : i1 to i32
    %c0_i32_0 = arith.constant 0 : i32
    %2 = arith.cmpi ne, %1, %c0_i32_0 : i32
    scf.if %2 {
      %cst_10 = arith.constant 0.000000e+00 : f32
      %12 = vector.broadcast %cst_10 : f32 to vector<16x128xf32>
      %c0_11 = arith.constant 0 : index
      %c0_12 = arith.constant 0 : index
      %13 = vector.load %arg7[%c0_11, %c0_12] : memref<16x128xf32, #tpu.memory_space<vmem>>, vector<16x128xf32>
      tpu.vector_store %arg7[%c0_11, %c0_12], %12 {strides = array<i32>} : memref<16x128xf32, #tpu.memory_space<vmem>>, vector<16x128xf32>,
    } else {
    }
    %c0 = arith.constant 0 : index
    %c0_1 = arith.constant 0 : index
    %3 = vector.load %arg3[%c0, %c0_1] : memref<16x256xbf16, #tpu.memory_space<vmem>>, vector<16x256xbf16>
    %c0_2 = arith.constant 0 : index
    %c0_3 = arith.constant 0 : index
    %4 = vector.load %arg7[%c0_2, %c0_3] : memref<16x128xf32, #tpu.memory_space<vmem>>, vector<16x128xf32>
    %c0_4 = arith.constant 0 : index
    %c0_5 = arith.constant 0 : index
    %5 = vector.load %arg4[%c0_4, %c0_5] : memref<256x128xbf16, #tpu.memory_space<vmem>>, vector<256x128xbf16>
    %cst = arith.constant dense<0.000000e+00> : vector<16x128xf32>
    %6 = tpu.matmul %3, %5, %cst {dimension_numbers = #tpu.dot_dimension_numbers<[1], [0], [0], [1], [0, 0, 1, 1], [], []>} : vector<16x256xbf16>, vector<256x128xbf16>, vector<16x128xf32> -> vector<16x128xf32>
    %7 = arith.addf %4, %6 : vector<16x128xf32>
    %c0_6 = arith.constant 0 : index
    %c0_7 = arith.constant 0 : index
    %8 = vector.load %arg7[%c0_6, %c0_7] : memref<16x128xf32, #tpu.memory_space<vmem>>, vector<16x128xf32>
    tpu.vector_store %arg7[%c0_6, %c0_7], %7 {strides = array<i32>} : memref<16x128xf32, #tpu.memory_space<vmem>>, vector<16x128xf32>,
    %c0_i32_8 = arith.constant 0 : i32
    %9 = arith.cmpi eq, %arg2, %c0_i32_8 : i32
    %10 = arith.extui %9 : i1 to i32
    %c0_i32_9 = arith.constant 0 : i32
    %11 = arith.cmpi ne, %10, %c0_i32_9 : i32
    scf.if %11 {
      %c0_10 = arith.constant 0 : index
      %c0_11 = arith.constant 0 : index
      %12 = vector.load %arg7[%c0_10, %c0_11] : memref<16x128xf32, #tpu.memory_space<vmem>>, vector<16x128xf32>
      %c0_12 = arith.constant 0 : index
      %c0_13 = arith.constant 0 : index
      %13 = vector.load %arg5[%c0_12, %c0_13] : memref<1x128xf32, #tpu.memory_space<vmem>>, vector<1x128xf32>
      %14 = vector.broadcast %13 : vector<1x128xf32> to vector<16x128xf32>
      %15 = arith.addf %12, %14 : vector<16x128xf32>
      %16 = arith.truncf %15 : vector<16x128xf32> to vector<16x128xbf16>
      %c0_14 = arith.constant 0 : index
      %c0_15 = arith.constant 0 : index
      %17 = vector.load %arg6[%c0_14, %c0_15] : memref<16x128xbf16, #tpu.memory_space<vmem>>, vector<16x128xbf16>
      tpu.vector_store %arg6[%c0_14, %c0_15], %16 {strides = array<i32>} : memref<16x128xbf16, #tpu.memory_space<vmem>>, vector<16x128xbf16>,
    } else {
    }
    return
  }
  func.func @transform_0(%arg0: i32, %arg1: i32, %arg2: i32) -> (i32, i32) {
    %c0_i32 = arith.constant 0 : i32
    return %arg0, %arg2 : i32, i32
  }
  func.func @transform_1(%arg0: i32, %arg1: i32, %arg2: i32) -> (i32, i32) {
    %c0_i32 = arith.constant 0 : i32
    return %arg2, %arg1 : i32, i32
  }
  func.func @transform_2(%arg0: i32, %arg1: i32, %arg2: i32) -> (i32, i32) {
    %c0_i32 = arith.constant 0 : i32
    %c0_i32_0 = arith.constant 0 : i32
    return %c0_i32, %arg1 : i32, i32
  }
  func.func @transform_3(%arg0: i32, %arg1: i32, %arg2: i32) -> (i32, i32) {
    %c0_i32 = arith.constant 0 : i32
    return %arg0, %arg1 : i32, i32
  }
}

module attributes {stable_mosaic.version = 11 : i64} {
  func.func @_mm_kernel(%arg0: i32, %arg1: i32, %arg2: i32, %arg3: memref<16x128xbf16, #tpu.memory_space<vmem>>, %arg4: memref<128x128xbf16, #tpu.memory_space<vmem>>, %arg5: memref<1x128xf32, #tpu.memory_space<vmem>>, %arg6: memref<1x128xf32, #tpu.memory_space<vmem>>, %arg7: memref<1x128xf32, #tpu.memory_space<vmem>>, %arg8: memref<16x128xbf16, #tpu.memory_space<vmem>>, %arg9: memref<16x128xf32, #tpu.memory_space<vmem>>) attributes {dimension_semantics = [#tpu.dimension_semantics<parallel>, #tpu.dimension_semantics<parallel>, #tpu.dimension_semantics<arbitrary>], iteration_bounds = array<i64: 1, 1, 1>, scalar_prefetch = 0 : i64, scratch_operands = 1 : i64, tpu.core_type = #tpu.core_type<tc>, window_params = [{transform_indices = @transform_0, window_bounds = array<i64: 16, 128>}, {transform_indices = @transform_1, window_bounds = array<i64: 128, 128>}, {transform_indices = @transform_2, window_bounds = array<i64: 1, 128>}, {transform_indices = @transform_3, window_bounds = array<i64: 1, 128>}, {transform_indices = @transform_4, window_bounds = array<i64: 1, 128>}, {transform_indices = @transform_5, window_bounds = array<i64: 16, 128>}]} {
    %c0_i32 = arith.constant 0 : i32
    %0 = arith.cmpi eq, %arg2, %c0_i32 : i32
    %1 = arith.extui %0 : i1 to i32
    %c0_i32_0 = arith.constant 0 : i32
    %2 = arith.cmpi ne, %1, %c0_i32_0 : i32
    scf.if %2 {
      %cst_20 = arith.constant 0.000000e+00 : f32
      %40 = vector.broadcast %cst_20 : f32 to vector<16x128xf32>
      %c0_21 = arith.constant 0 : index
      %c0_22 = arith.constant 0 : index
      %41 = vector.load %arg9[%c0_21, %c0_22] : memref<16x128xf32, #tpu.memory_space<vmem>>, vector<16x128xf32>
      tpu.vector_store %arg9[%c0_21, %c0_22], %40 {strides = array<i32>} : memref<16x128xf32, #tpu.memory_space<vmem>>, vector<16x128xf32>,
    } else {
    }
    %c0 = arith.constant 0 : index
    %c0_1 = arith.constant 0 : index
    %3 = vector.load %arg3[%c0, %c0_1] : memref<16x128xbf16, #tpu.memory_space<vmem>>, vector<16x128xbf16>
    %4 = arith.extf %3 : vector<16x128xbf16> to vector<16x128xf32>
    %cst = arith.constant dense<0.000000e+00> : vector<16xf32>
    %5 = vector.multi_reduction <add>, %4, %cst [1] : vector<16x128xf32> to vector<16xf32>
    %6 = vector.shape_cast %5 : vector<16xf32> to vector<16x1xf32>
    %cst_2 = arith.constant 3.125000e-02 : f32
    %7 = vector.broadcast %cst_2 : f32 to vector<16x1xf32>
    %8 = arith.mulf %6, %7 : vector<16x1xf32>
    %9 = arith.mulf %4, %4 : vector<16x128xf32>
    %cst_3 = arith.constant dense<0.000000e+00> : vector<16xf32>
    %10 = vector.multi_reduction <add>, %9, %cst_3 [1] : vector<16x128xf32> to vector<16xf32>
    %11 = vector.shape_cast %10 : vector<16xf32> to vector<16x1xf32>
    %cst_4 = arith.constant 3.125000e-02 : f32
    %12 = vector.broadcast %cst_4 : f32 to vector<16x1xf32>
    %13 = arith.mulf %11, %12 : vector<16x1xf32>
    %14 = arith.mulf %8, %8 : vector<16x1xf32>
    %15 = arith.subf %13, %14 : vector<16x1xf32>
    %cst_5 = arith.constant 0.000000e+00 : f32
    %16 = vector.broadcast %cst_5 : f32 to vector<16x1xf32>
    %17 = arith.maximumf %15, %16 : vector<16x1xf32>
    %18 = vector.broadcast %8 : vector<16x1xf32> to vector<16x128xf32>
    %19 = arith.subf %4, %18 : vector<16x128xf32>
    %cst_6 = arith.constant 9.99999997E-7 : f32
    %20 = vector.broadcast %cst_6 : f32 to vector<16x1xf32>
    %21 = arith.addf %17, %20 : vector<16x1xf32>
    %22 = math.rsqrt %21 : vector<16x1xf32>
    %23 = vector.broadcast %22 : vector<16x1xf32> to vector<16x128xf32>
    %24 = arith.mulf %19, %23 : vector<16x128xf32>
    %c0_7 = arith.constant 0 : index
    %c0_8 = arith.constant 0 : index
    %25 = vector.load %arg6[%c0_7, %c0_8] : memref<1x128xf32, #tpu.memory_space<vmem>>, vector<1x128xf32>
    %26 = vector.broadcast %25 : vector<1x128xf32> to vector<16x128xf32>
    %27 = arith.mulf %24, %26 : vector<16x128xf32>
    %c0_9 = arith.constant 0 : index
    %c0_10 = arith.constant 0 : index
    %28 = vector.load %arg7[%c0_9, %c0_10] : memref<1x128xf32, #tpu.memory_space<vmem>>, vector<1x128xf32>
    %29 = vector.broadcast %28 : vector<1x128xf32> to vector<16x128xf32>
    %30 = arith.addf %27, %29 : vector<16x128xf32>
    %31 = arith.truncf %30 : vector<16x128xf32> to vector<16x128xbf16>
    %c0_11 = arith.constant 0 : index
    %c0_12 = arith.constant 0 : index
    %32 = vector.load %arg9[%c0_11, %c0_12] : memref<16x128xf32, #tpu.memory_space<vmem>>, vector<16x128xf32>
    %c0_13 = arith.constant 0 : index
    %c0_14 = arith.constant 0 : index
    %33 = vector.load %arg4[%c0_13, %c0_14] : memref<128x128xbf16, #tpu.memory_space<vmem>>, vector<128x128xbf16>
    %cst_15 = arith.constant dense<0.000000e+00> : vector<16x128xf32>
    %34 = tpu.matmul %31, %33, %cst_15 {dimension_numbers = #tpu.dot_dimension_numbers<[1], [0], [0], [1], [0, 0, 1, 1], [], []>} : vector<16x128xbf16>, vector<128x128xbf16>, vector<16x128xf32> -> vector<16x128xf32>
    %35 = arith.addf %32, %34 : vector<16x128xf32>
    %c0_16 = arith.constant 0 : index
    %c0_17 = arith.constant 0 : index
    %36 = vector.load %arg9[%c0_16, %c0_17] : memref<16x128xf32, #tpu.memory_space<vmem>>, vector<16x128xf32>
    tpu.vector_store %arg9[%c0_16, %c0_17], %35 {strides = array<i32>} : memref<16x128xf32, #tpu.memory_space<vmem>>, vector<16x128xf32>,
    %c0_i32_18 = arith.constant 0 : i32
    %37 = arith.cmpi eq, %arg2, %c0_i32_18 : i32
    %38 = arith.extui %37 : i1 to i32
    %c0_i32_19 = arith.constant 0 : i32
    %39 = arith.cmpi ne, %38, %c0_i32_19 : i32
    scf.if %39 {
      %c0_20 = arith.constant 0 : index
      %c0_21 = arith.constant 0 : index
      %40 = vector.load %arg9[%c0_20, %c0_21] : memref<16x128xf32, #tpu.memory_space<vmem>>, vector<16x128xf32>
      %c0_22 = arith.constant 0 : index
      %c0_23 = arith.constant 0 : index
      %41 = vector.load %arg5[%c0_22, %c0_23] : memref<1x128xf32, #tpu.memory_space<vmem>>, vector<1x128xf32>
      %42 = vector.broadcast %41 : vector<1x128xf32> to vector<16x128xf32>
      %43 = arith.addf %40, %42 : vector<16x128xf32>
      %44 = arith.truncf %43 : vector<16x128xf32> to vector<16x128xbf16>
      %c0_24 = arith.constant 0 : index
      %c0_25 = arith.constant 0 : index
      %45 = vector.load %arg8[%c0_24, %c0_25] : memref<16x128xbf16, #tpu.memory_space<vmem>>, vector<16x128xbf16>
      tpu.vector_store %arg8[%c0_24, %c0_25], %44 {strides = array<i32>} : memref<16x128xbf16, #tpu.memory_space<vmem>>, vector<16x128xbf16>,
    } else {
    }
    return
  }
  func.func @transform_0(%arg0: i32, %arg1: i32, %arg2: i32) -> (i32, i32) {
    %c0_i32 = arith.constant 0 : i32
    return %arg0, %arg2 : i32, i32
  }
  func.func @transform_1(%arg0: i32, %arg1: i32, %arg2: i32) -> (i32, i32) {
    %c0_i32 = arith.constant 0 : i32
    return %arg2, %arg1 : i32, i32
  }
  func.func @transform_2(%arg0: i32, %arg1: i32, %arg2: i32) -> (i32, i32) {
    %c0_i32 = arith.constant 0 : i32
    %c0_i32_0 = arith.constant 0 : i32
    return %c0_i32, %arg1 : i32, i32
  }
  func.func @transform_3(%arg0: i32, %arg1: i32, %arg2: i32) -> (i32, i32) {
    %c0_i32 = arith.constant 0 : i32
    %c0_i32_0 = arith.constant 0 : i32
    return %c0_i32, %arg2 : i32, i32
  }
  func.func @transform_4(%arg0: i32, %arg1: i32, %arg2: i32) -> (i32, i32) {
    %c0_i32 = arith.constant 0 : i32
    %c0_i32_0 = arith.constant 0 : i32
    return %c0_i32, %arg2 : i32, i32
  }
  func.func @transform_5(%arg0: i32, %arg1: i32, %arg2: i32) -> (i32, i32) {
    %c0_i32 = arith.constant 0 : i32
    return %arg0, %arg1 : i32, i32
  }
}

module attributes {stable_mosaic.version = 11 : i64} {
  func.func @_mm_kernel(%arg0: i32, %arg1: i32, %arg2: i32, %arg3: memref<16x128xbf16, #tpu.memory_space<vmem>>, %arg4: memref<128x128xbf16, #tpu.memory_space<vmem>>, %arg5: memref<1x128xf32, #tpu.memory_space<vmem>>, %arg6: memref<16x128xbf16, #tpu.memory_space<vmem>>, %arg7: memref<16x128xbf16, #tpu.memory_space<vmem>>, %arg8: memref<16x128xf32, #tpu.memory_space<vmem>>) attributes {dimension_semantics = [#tpu.dimension_semantics<parallel>, #tpu.dimension_semantics<parallel>, #tpu.dimension_semantics<arbitrary>], iteration_bounds = array<i64: 1, 1, 1>, scalar_prefetch = 0 : i64, scratch_operands = 1 : i64, tpu.core_type = #tpu.core_type<tc>, window_params = [{transform_indices = @transform_0, window_bounds = array<i64: 16, 128>}, {transform_indices = @transform_1, window_bounds = array<i64: 128, 128>}, {transform_indices = @transform_2, window_bounds = array<i64: 1, 128>}, {transform_indices = @transform_3, window_bounds = array<i64: 16, 128>}, {transform_indices = @transform_4, window_bounds = array<i64: 16, 128>}]} {
    %c0_i32 = arith.constant 0 : i32
    %0 = arith.cmpi eq, %arg2, %c0_i32 : i32
    %1 = arith.extui %0 : i1 to i32
    %c0_i32_0 = arith.constant 0 : i32
    %2 = arith.cmpi ne, %1, %c0_i32_0 : i32
    scf.if %2 {
      %cst_10 = arith.constant 0.000000e+00 : f32
      %12 = vector.broadcast %cst_10 : f32 to vector<16x128xf32>
      %c0_11 = arith.constant 0 : index
      %c0_12 = arith.constant 0 : index
      %13 = vector.load %arg8[%c0_11, %c0_12] : memref<16x128xf32, #tpu.memory_space<vmem>>, vector<16x128xf32>
      tpu.vector_store %arg8[%c0_11, %c0_12], %12 {strides = array<i32>} : memref<16x128xf32, #tpu.memory_space<vmem>>, vector<16x128xf32>,
    } else {
    }
    %c0 = arith.constant 0 : index
    %c0_1 = arith.constant 0 : index
    %3 = vector.load %arg3[%c0, %c0_1] : memref<16x128xbf16, #tpu.memory_space<vmem>>, vector<16x128xbf16>
    %c0_2 = arith.constant 0 : index
    %c0_3 = arith.constant 0 : index
    %4 = vector.load %arg8[%c0_2, %c0_3] : memref<16x128xf32, #tpu.memory_space<vmem>>, vector<16x128xf32>
    %c0_4 = arith.constant 0 : index
    %c0_5 = arith.constant 0 : index
    %5 = vector.load %arg4[%c0_4, %c0_5] : memref<128x128xbf16, #tpu.memory_space<vmem>>, vector<128x128xbf16>
    %cst = arith.constant dense<0.000000e+00> : vector<16x128xf32>
    %6 = tpu.matmul %3, %5, %cst {dimension_numbers = #tpu.dot_dimension_numbers<[1], [0], [0], [1], [0, 0, 1, 1], [], []>} : vector<16x128xbf16>, vector<128x128xbf16>, vector<16x128xf32> -> vector<16x128xf32>
    %7 = arith.addf %4, %6 : vector<16x128xf32>
    %c0_6 = arith.constant 0 : index
    %c0_7 = arith.constant 0 : index
    %8 = vector.load %arg8[%c0_6, %c0_7] : memref<16x128xf32, #tpu.memory_space<vmem>>, vector<16x128xf32>
    tpu.vector_store %arg8[%c0_6, %c0_7], %7 {strides = array<i32>} : memref<16x128xf32, #tpu.memory_space<vmem>>, vector<16x128xf32>,
    %c0_i32_8 = arith.constant 0 : i32
    %9 = arith.cmpi eq, %arg2, %c0_i32_8 : i32
    %10 = arith.extui %9 : i1 to i32
    %c0_i32_9 = arith.constant 0 : i32
    %11 = arith.cmpi ne, %10, %c0_i32_9 : i32
    scf.if %11 {
      %c0_10 = arith.constant 0 : index
      %c0_11 = arith.constant 0 : index
      %12 = vector.load %arg8[%c0_10, %c0_11] : memref<16x128xf32, #tpu.memory_space<vmem>>, vector<16x128xf32>
      %c0_12 = arith.constant 0 : index
      %c0_13 = arith.constant 0 : index
      %13 = vector.load %arg5[%c0_12, %c0_13] : memref<1x128xf32, #tpu.memory_space<vmem>>, vector<1x128xf32>
      %14 = vector.broadcast %13 : vector<1x128xf32> to vector<16x128xf32>
      %15 = arith.addf %12, %14 : vector<16x128xf32>
      %c0_14 = arith.constant 0 : index
      %c0_15 = arith.constant 0 : index
      %16 = vector.load %arg6[%c0_14, %c0_15] : memref<16x128xbf16, #tpu.memory_space<vmem>>, vector<16x128xbf16>
      %17 = arith.extf %16 : vector<16x128xbf16> to vector<16x128xf32>
      %18 = arith.addf %15, %17 : vector<16x128xf32>
      %19 = arith.truncf %18 : vector<16x128xf32> to vector<16x128xbf16>
      %c0_16 = arith.constant 0 : index
      %c0_17 = arith.constant 0 : index
      %20 = vector.load %arg7[%c0_16, %c0_17] : memref<16x128xbf16, #tpu.memory_space<vmem>>, vector<16x128xbf16>
      tpu.vector_store %arg7[%c0_16, %c0_17], %19 {strides = array<i32>} : memref<16x128xbf16, #tpu.memory_space<vmem>>, vector<16x128xbf16>,
    } else {
    }
    return
  }
  func.func @transform_0(%arg0: i32, %arg1: i32, %arg2: i32) -> (i32, i32) {
    %c0_i32 = arith.constant 0 : i32
    return %arg0, %arg2 : i32, i32
  }
  func.func @transform_1(%arg0: i32, %arg1: i32, %arg2: i32) -> (i32, i32) {
    %c0_i32 = arith.constant 0 : i32
    return %arg2, %arg1 : i32, i32
  }
  func.func @transform_2(%arg0: i32, %arg1: i32, %arg2: i32) -> (i32, i32) {
    %c0_i32 = arith.constant 0 : i32
    %c0_i32_0 = arith.constant 0 : i32
    return %c0_i32, %arg1 : i32, i32
  }
  func.func @transform_3(%arg0: i32, %arg1: i32, %arg2: i32) -> (i32, i32) {
    %c0_i32 = arith.constant 0 : i32
    return %arg0, %arg1 : i32, i32
  }
  func.func @transform_4(%arg0: i32, %arg1: i32, %arg2: i32) -> (i32, i32) {
    %c0_i32 = arith.constant 0 : i32
    return %arg0, %arg1 : i32, i32
  }
}

module attributes {stable_mosaic.version = 11 : i64} {
  func.func @_attention_kernel(%arg0: i32, %arg1: memref<1x5x96xbf16, #tpu.memory_space<vmem>>, %arg2: memref<1x5x32xbf16, #tpu.memory_space<vmem>>) attributes {dimension_semantics = [#tpu.dimension_semantics<parallel>], iteration_bounds = array<i64: 2>, scalar_prefetch = 0 : i64, scratch_operands = 0 : i64, tpu.core_type = #tpu.core_type<tc>, window_params = [{transform_indices = @transform_0, window_bounds = array<i64: 1, 5, 96>}, {transform_indices = @transform_1, window_bounds = array<i64: 1, 5, 32>}]} {
    %c0 = arith.constant 0 : index
    %c0_0 = arith.constant 0 : index
    %c0_1 = arith.constant 0 : index
    %0 = vector.load %arg1[%c0, %c0_0, %c0_1] : memref<1x5x96xbf16, #tpu.memory_space<vmem>>, vector<1x5x96xbf16>
    %1 = vector.shape_cast %0 : vector<1x5x96xbf16> to vector<5x96xbf16>
    %2 = vector.extract_strided_slice %1 {offsets = [0, 0], sizes = [5, 8], strides = [1, 1]} : vector<5x96xbf16> to vector<5x8xbf16>
    %3 = vector.extract_strided_slice %1 {offsets = [0, 32], sizes = [5, 8], strides = [1, 1]} : vector<5x96xbf16> to vector<5x8xbf16>
    %4 = vector.extract_strided_slice %1 {offsets = [0, 64], sizes = [5, 8], strides = [1, 1]} : vector<5x96xbf16> to vector<5x8xbf16>
    %cst = arith.constant dense<0.000000e+00> : vector<5x5xf32>
    %5 = tpu.matmul %2, %3, %cst {dimension_numbers = #tpu.dot_dimension_numbers<[1], [1], [0], [0], [0, 0, 1, 0], [], []>} : vector<5x8xbf16>, vector<5x8xbf16>, vector<5x5xf32> -> vector<5x5xf32>
    %cst_2 = arith.constant 0.353553385 : f32
    %6 = vector.broadcast %cst_2 : f32 to vector<5x5xf32>
    %7 = arith.mulf %5, %6 : vector<5x5xf32>
    %cst_3 = arith.constant dense<0xFF800000> : vector<5xf32>
    %8 = vector.multi_reduction <maximumf>, %7, %cst_3 [1] : vector<5x5xf32> to vector<5xf32>
    %9 = vector.shape_cast %8 : vector<5xf32> to vector<5x1xf32>
    %10 = vector.broadcast %9 : vector<5x1xf32> to vector<5x5xf32>
    %11 = arith.subf %7, %10 : vector<5x5xf32>
    %12 = math.exp %11 : vector<5x5xf32>
    %cst_4 = arith.constant dense<0.000000e+00> : vector<5xf32>
    %13 = vector.multi_reduction <add>, %12, %cst_4 [1] : vector<5x5xf32> to vector<5xf32>
    %14 = vector.shape_cast %13 : vector<5xf32> to vector<5x1xf32>
    %15 = tpu.reciprocal %14 {approx = true} : vector<5x1xf32> -> vector<5x1xf32>
    %16 = vector.broadcast %15 : vector<5x1xf32> to vector<5x5xf32>
    %17 = arith.mulf %12, %16 : vector<5x5xf32>
    %18 = arith.truncf %17 : vector<5x5xf32> to vector<5x5xbf16>
    %cst_5 = arith.constant dense<0.000000e+00> : vector<5x8xf32>
    %19 = tpu.matmul %18, %4, %cst_5 {dimension_numbers = #tpu.dot_dimension_numbers<[1], [0], [0], [1], [0, 0, 1, 1], [], []>} : vector<5x5xbf16>, vector<5x8xbf16>, vector<5x8xf32> -> vector<5x8xf32>
    %20 = vector.extract_strided_slice %1 {offsets = [0, 8], sizes = [5, 8], strides = [1, 1]} : vector<5x96xbf16> to vector<5x8xbf16>
    %21 = vector.extract_strided_slice %1 {offsets = [0, 40], sizes = [5, 8], strides = [1, 1]} : vector<5x96xbf16> to vector<5x8xbf16>
    %22 = vector.extract_strided_slice %1 {offsets = [0, 72], sizes = [5, 8], strides = [1, 1]} : vector<5x96xbf16> to vector<5x8xbf16>
    %cst_6 = arith.constant dense<0.000000e+00> : vector<5x5xf32>
    %23 = tpu.matmul %20, %21, %cst_6 {dimension_numbers = #tpu.dot_dimension_numbers<[1], [1], [0], [0], [0, 0, 1, 0], [], []>} : vector<5x8xbf16>, vector<5x8xbf16>, vector<5x5xf32> -> vector<5x5xf32>
    %cst_7 = arith.constant 0.353553385 : f32
    %24 = vector.broadcast %cst_7 : f32 to vector<5x5xf32>
    %25 = arith.mulf %23, %24 : vector<5x5xf32>
    %cst_8 = arith.constant dense<0xFF800000> : vector<5xf32>
    %26 = vector.multi_reduction <maximumf>, %25, %cst_8 [1] : vector<5x5xf32> to vector<5xf32>
    %27 = vector.shape_cast %26 : vector<5xf32> to vector<5x1xf32>
    %28 = vector.broadcast %27 : vector<5x1xf32> to vector<5x5xf32>
    %29 = arith.subf %25, %28 : vector<5x5xf32>
    %30 = math.exp %29 : vector<5x5xf32>
    %cst_9 = arith.constant dense<0.000000e+00> : vector<5xf32>
    %31 = vector.multi_reduction <add>, %30, %cst_9 [1] : vector<5x5xf32> to vector<5xf32>
    %32 = vector.shape_cast %31 : vector<5xf32> to vector<5x1xf32>
    %33 = tpu.reciprocal %32 {approx = true} : vector<5x1xf32> -> vector<5x1xf32>
    %34 = vector.broadcast %33 : vector<5x1xf32> to vector<5x5xf32>
    %35 = arith.mulf %30, %34 : vector<5x5xf32>
    %36 = arith.truncf %35 : vector<5x5xf32> to vector<5x5xbf16>
    %cst_10 = arith.constant dense<0.000000e+00> : vector<5x8xf32>
    %37 = tpu.matmul %36, %22, %cst_10 {dimension_numbers = #tpu.dot_dimension_numbers<[1], [0], [0], [1], [0, 0, 1, 1], [], []>} : vector<5x5xbf16>, vector<5x8xbf16>, vector<5x8xf32> -> vector<5x8xf32>
    %38 = vector.extract_strided_slice %1 {offsets = [0, 16], sizes = [5, 8], strides = [1, 1]} : vector<5x96xbf16> to vector<5x8xbf16>
    %39 = vector.extract_strided_slice %1 {offsets = [0, 48], sizes = [5, 8], strides = [1, 1]} : vector<5x96xbf16> to vector<5x8xbf16>
    %40 = vector.extract_strided_slice %1 {offsets = [0, 80], sizes = [5, 8], strides = [1, 1]} : vector<5x96xbf16> to vector<5x8xbf16>
    %cst_11 = arith.constant dense<0.000000e+00> : vector<5x5xf32>
    %41 = tpu.matmul %38, %39, %cst_11 {dimension_numbers = #tpu.dot_dimension_numbers<[1], [1], [0], [0], [0, 0, 1, 0], [], []>} : vector<5x8xbf16>, vector<5x8xbf16>, vector<5x5xf32> -> vector<5x5xf32>
    %cst_12 = arith.constant 0.353553385 : f32
    %42 = vector.broadcast %cst_12 : f32 to vector<5x5xf32>
    %43 = arith.mulf %41, %42 : vector<5x5xf32>
    %cst_13 = arith.constant dense<0xFF800000> : vector<5xf32>
    %44 = vector.multi_reduction <maximumf>, %43, %cst_13 [1] : vector<5x5xf32> to vector<5xf32>
    %45 = vector.shape_cast %44 : vector<5xf32> to vector<5x1xf32>
    %46 = vector.broadcast %45 : vector<5x1xf32> to vector<5x5xf32>
    %47 = arith.subf %43, %46 : vector<5x5xf32>
    %48 = math.exp %47 : vector<5x5xf32>
    %cst_14 = arith.constant dense<0.000000e+00> : vector<5xf32>
    %49 = vector.multi_reduction <add>, %48, %cst_14 [1] : vector<5x5xf32> to vector<5xf32>
    %50 = vector.shape_cast %49 : vector<5xf32> to vector<5x1xf32>
    %51 = tpu.reciprocal %50 {approx = true} : vector<5x1xf32> -> vector<5x1xf32>
    %52 = vector.broadcast %51 : vector<5x1xf32> to vector<5x5xf32>
    %53 = arith.mulf %48, %52 : vector<5x5xf32>
    %54 = arith.truncf %53 : vector<5x5xf32> to vector<5x5xbf16>
    %cst_15 = arith.constant dense<0.000000e+00> : vector<5x8xf32>
    %55 = tpu.matmul %54, %40, %cst_15 {dimension_numbers = #tpu.dot_dimension_numbers<[1], [0], [0], [1], [0, 0, 1, 1], [], []>} : vector<5x5xbf16>, vector<5x8xbf16>, vector<5x8xf32> -> vector<5x8xf32>
    %56 = vector.extract_strided_slice %1 {offsets = [0, 24], sizes = [5, 8], strides = [1, 1]} : vector<5x96xbf16> to vector<5x8xbf16>
    %57 = vector.extract_strided_slice %1 {offsets = [0, 56], sizes = [5, 8], strides = [1, 1]} : vector<5x96xbf16> to vector<5x8xbf16>
    %58 = vector.extract_strided_slice %1 {offsets = [0, 88], sizes = [5, 8], strides = [1, 1]} : vector<5x96xbf16> to vector<5x8xbf16>
    %cst_16 = arith.constant dense<0.000000e+00> : vector<5x5xf32>
    %59 = tpu.matmul %56, %57, %cst_16 {dimension_numbers = #tpu.dot_dimension_numbers<[1], [1], [0], [0], [0, 0, 1, 0], [], []>} : vector<5x8xbf16>, vector<5x8xbf16>, vector<5x5xf32> -> vector<5x5xf32>
    %cst_17 = arith.constant 0.353553385 : f32
    %60 = vector.broadcast %cst_17 : f32 to vector<5x5xf32>
    %61 = arith.mulf %59, %60 : vector<5x5xf32>
    %cst_18 = arith.constant dense<0xFF800000> : vector<5xf32>
    %62 = vector.multi_reduction <maximumf>, %61, %cst_18 [1] : vector<5x5xf32> to vector<5xf32>
    %63 = vector.shape_cast %62 : vector<5xf32> to vector<5x1xf32>
    %64 = vector.broadcast %63 : vector<5x1xf32> to vector<5x5xf32>
    %65 = arith.subf %61, %64 : vector<5x5xf32>
    %66 = math.exp %65 : vector<5x5xf32>
    %cst_19 = arith.constant dense<0.000000e+00> : vector<5xf32>
    %67 = vector.multi_reduction <add>, %66, %cst_19 [1] : vector<5x5xf32> to vector<5xf32>
    %68 = vector.shape_cast %67 : vector<5xf32> to vector<5x1xf32>
    %69 = tpu.reciprocal %68 {approx = true} : vector<5x1xf32> -> vector<5x1xf32>
    %70 = vector.broadcast %69 : vector<5x1xf32> to vector<5x5xf32>
    %71 = arith.mulf %66, %70 : vector<5x5xf32>
    %72 = arith.truncf %71 : vector<5x5xf32> to vector<5x5xbf16>
    %cst_20 = arith.constant dense<0.000000e+00> : vector<5x8xf32>
    %73 = tpu.matmul %72, %58, %cst_20 {dimension_numbers = #tpu.dot_dimension_numbers<[1], [0], [0], [1], [0, 0, 1, 1], [], []>} : vector<5x5xbf16>, vector<5x8xbf16>, vector<5x8xf32> -> vector<5x8xf32>
    %74 = tpu.concatenate %19, %37, %55, %73 in 1 : vector<5x8xf32>, vector<5x8xf32>, vector<5x8xf32>, vector<5x8xf32> -> vector<5x32xf32>
    %75 = arith.truncf %74 : vector<5x32xf32> to vector<5x32xbf16>
    %c0_21 = arith.constant 0 : index
    %c0_22 = arith.constant 0 : index
    %c0_23 = arith.constant 0 : index
    %76 = vector.load %arg2[%c0_21, %c0_22, %c0_23] : memref<1x5x32xbf16, #tpu.memory_space<vmem>>, vector<1x5x32xbf16>
    %77 = vector.shape_cast %76 : vector<1x5x32xbf16> to vector<5x32xbf16>
    %78 = vector.shape_cast %75 : vector<5x32xbf16> to vector<1x5x32xbf16>
    tpu.vector_store %arg2[%c0_21, %c0_22, %c0_23], %78 {strides = array<i32>} : memref<1x5x32xbf16, #tpu.memory_space<vmem>>, vector<1x5x32xbf16>,
    return
  }
  func.func @transform_0(%arg0: i32) -> (i32, i32, i32) {
    %c0_i32 = arith.constant 0 : i32
    %c0_i32_0 = arith.constant 0 : i32
    %c0_i32_1 = arith.constant 0 : i32
    return %arg0, %c0_i32, %c0_i32_0 : i32, i32, i32
  }
  func.func @transform_1(%arg0: i32) -> (i32, i32, i32) {
    %c0_i32 = arith.constant 0 : i32
    %c0_i32_0 = arith.constant 0 : i32
    %c0_i32_1 = arith.constant 0 : i32
    return %arg0, %c0_i32, %c0_i32_0 : i32, i32, i32
  }
}

module attributes {stable_mosaic.version = 11 : i64} {
  func.func @_mm_kernel(%arg0: i32, %arg1: i32, %arg2: i32, %arg3: memref<16x128xbf16, #tpu.memory_space<vmem>>, %arg4: memref<128x128xbf16, #tpu.memory_space<vmem>>, %arg5: memref<1x128xf32, #tpu.memory_space<vmem>>, %arg6: memref<1x128xf32, #tpu.memory_space<vmem>>, %arg7: memref<1x128xf32, #tpu.memory_space<vmem>>, %arg8: memref<16x128xbf16, #tpu.memory_space<vmem>>, %arg9: memref<16x128xf32, #tpu.memory_space<vmem>>) attributes {dimension_semantics = [#tpu.dimension_semantics<parallel>, #tpu.dimension_semantics<parallel>, #tpu.dimension_semantics<arbitrary>], iteration_bounds = array<i64: 1, 1, 1>, scalar_prefetch = 0 : i64, scratch_operands = 1 : i64, tpu.core_type = #tpu.core_type<tc>, window_params = [{transform_indices = @transform_0, window_bounds = array<i64: 16, 128>}, {transform_indices = @transform_1, window_bounds = array<i64: 128, 128>}, {transform_indices = @transform_2, window_bounds = array<i64: 1, 128>}, {transform_indices = @transform_3, window_bounds = array<i64: 1, 128>}, {transform_indices = @transform_4, window_bounds = array<i64: 1, 128>}, {transform_indices = @transform_5, window_bounds = array<i64: 16, 128>}]} {
    %c0_i32 = arith.constant 0 : i32
    %0 = arith.cmpi eq, %arg2, %c0_i32 : i32
    %1 = arith.extui %0 : i1 to i32
    %c0_i32_0 = arith.constant 0 : i32
    %2 = arith.cmpi ne, %1, %c0_i32_0 : i32
    scf.if %2 {
      %cst_20 = arith.constant 0.000000e+00 : f32
      %40 = vector.broadcast %cst_20 : f32 to vector<16x128xf32>
      %c0_21 = arith.constant 0 : index
      %c0_22 = arith.constant 0 : index
      %41 = vector.load %arg9[%c0_21, %c0_22] : memref<16x128xf32, #tpu.memory_space<vmem>>, vector<16x128xf32>
      tpu.vector_store %arg9[%c0_21, %c0_22], %40 {strides = array<i32>} : memref<16x128xf32, #tpu.memory_space<vmem>>, vector<16x128xf32>,
    } else {
    }
    %c0 = arith.constant 0 : index
    %c0_1 = arith.constant 0 : index
    %3 = vector.load %arg3[%c0, %c0_1] : memref<16x128xbf16, #tpu.memory_space<vmem>>, vector<16x128xbf16>
    %4 = arith.extf %3 : vector<16x128xbf16> to vector<16x128xf32>
    %cst = arith.constant dense<0.000000e+00> : vector<16xf32>
    %5 = vector.multi_reduction <add>, %4, %cst [1] : vector<16x128xf32> to vector<16xf32>
    %6 = vector.shape_cast %5 : vector<16xf32> to vector<16x1xf32>
    %cst_2 = arith.constant 3.125000e-02 : f32
    %7 = vector.broadcast %cst_2 : f32 to vector<16x1xf32>
    %8 = arith.mulf %6, %7 : vector<16x1xf32>
    %9 = arith.mulf %4, %4 : vector<16x128xf32>
    %cst_3 = arith.constant dense<0.000000e+00> : vector<16xf32>
    %10 = vector.multi_reduction <add>, %9, %cst_3 [1] : vector<16x128xf32> to vector<16xf32>
    %11 = vector.shape_cast %10 : vector<16xf32> to vector<16x1xf32>
    %cst_4 = arith.constant 3.125000e-02 : f32
    %12 = vector.broadcast %cst_4 : f32 to vector<16x1xf32>
    %13 = arith.mulf %11, %12 : vector<16x1xf32>
    %14 = arith.mulf %8, %8 : vector<16x1xf32>
    %15 = arith.subf %13, %14 : vector<16x1xf32>
    %cst_5 = arith.constant 0.000000e+00 : f32
    %16 = vector.broadcast %cst_5 : f32 to vector<16x1xf32>
    %17 = arith.maximumf %15, %16 : vector<16x1xf32>
    %18 = vector.broadcast %8 : vector<16x1xf32> to vector<16x128xf32>
    %19 = arith.subf %4, %18 : vector<16x128xf32>
    %cst_6 = arith.constant 9.99999997E-7 : f32
    %20 = vector.broadcast %cst_6 : f32 to vector<16x1xf32>
    %21 = arith.addf %17, %20 : vector<16x1xf32>
    %22 = math.rsqrt %21 : vector<16x1xf32>
    %23 = vector.broadcast %22 : vector<16x1xf32> to vector<16x128xf32>
    %24 = arith.mulf %19, %23 : vector<16x128xf32>
    %c0_7 = arith.constant 0 : index
    %c0_8 = arith.constant 0 : index
    %25 = vector.load %arg6[%c0_7, %c0_8] : memref<1x128xf32, #tpu.memory_space<vmem>>, vector<1x128xf32>
    %26 = vector.broadcast %25 : vector<1x128xf32> to vector<16x128xf32>
    %27 = arith.mulf %24, %26 : vector<16x128xf32>
    %c0_9 = arith.constant 0 : index
    %c0_10 = arith.constant 0 : index
    %28 = vector.load %arg7[%c0_9, %c0_10] : memref<1x128xf32, #tpu.memory_space<vmem>>, vector<1x128xf32>
    %29 = vector.broadcast %28 : vector<1x128xf32> to vector<16x128xf32>
    %30 = arith.addf %27, %29 : vector<16x128xf32>
    %31 = arith.truncf %30 : vector<16x128xf32> to vector<16x128xbf16>
    %c0_11 = arith.constant 0 : index
    %c0_12 = arith.constant 0 : index
    %32 = vector.load %arg9[%c0_11, %c0_12] : memref<16x128xf32, #tpu.memory_space<vmem>>, vector<16x128xf32>
    %c0_13 = arith.constant 0 : index
    %c0_14 = arith.constant 0 : index
    %33 = vector.load %arg4[%c0_13, %c0_14] : memref<128x128xbf16, #tpu.memory_space<vmem>>, vector<128x128xbf16>
    %cst_15 = arith.constant dense<0.000000e+00> : vector<16x128xf32>
    %34 = tpu.matmul %31, %33, %cst_15 {dimension_numbers = #tpu.dot_dimension_numbers<[1], [0], [0], [1], [0, 0, 1, 1], [], []>} : vector<16x128xbf16>, vector<128x128xbf16>, vector<16x128xf32> -> vector<16x128xf32>
    %35 = arith.addf %32, %34 : vector<16x128xf32>
    %c0_16 = arith.constant 0 : index
    %c0_17 = arith.constant 0 : index
    %36 = vector.load %arg9[%c0_16, %c0_17] : memref<16x128xf32, #tpu.memory_space<vmem>>, vector<16x128xf32>
    tpu.vector_store %arg9[%c0_16, %c0_17], %35 {strides = array<i32>} : memref<16x128xf32, #tpu.memory_space<vmem>>, vector<16x128xf32>,
    %c0_i32_18 = arith.constant 0 : i32
    %37 = arith.cmpi eq, %arg2, %c0_i32_18 : i32
    %38 = arith.extui %37 : i1 to i32
    %c0_i32_19 = arith.constant 0 : i32
    %39 = arith.cmpi ne, %38, %c0_i32_19 : i32
    scf.if %39 {
      %c0_20 = arith.constant 0 : index
      %c0_21 = arith.constant 0 : index
      %40 = vector.load %arg9[%c0_20, %c0_21] : memref<16x128xf32, #tpu.memory_space<vmem>>, vector<16x128xf32>
      %c0_22 = arith.constant 0 : index
      %c0_23 = arith.constant 0 : index
      %41 = vector.load %arg5[%c0_22, %c0_23] : memref<1x128xf32, #tpu.memory_space<vmem>>, vector<1x128xf32>
      %42 = vector.broadcast %41 : vector<1x128xf32> to vector<16x128xf32>
      %43 = arith.addf %40, %42 : vector<16x128xf32>
      %cst_24 = arith.constant 5.000000e-01 : f32
      %44 = vector.broadcast %cst_24 : f32 to vector<16x128xf32>
      %45 = arith.mulf %44, %43 : vector<16x128xf32>
      %cst_25 = arith.constant 0.707106769 : f32
      %46 = vector.broadcast %cst_25 : f32 to vector<16x128xf32>
      %47 = arith.mulf %43, %46 : vector<16x128xf32>
      %48 = math.absf %47 : vector<16x128xf32>
      %cst_26 = arith.constant 0.327591091 : f32
      %49 = vector.broadcast %cst_26 : f32 to vector<16x128xf32>
      %50 = arith.mulf %49, %48 : vector<16x128xf32>
      %cst_27 = arith.constant 1.000000e+00 : f32
      %51 = vector.broadcast %cst_27 : f32 to vector<16x128xf32>
      %52 = arith.addf %51, %50 : vector<16x128xf32>
      %53 = tpu.reciprocal %52 {approx = true} : vector<16x128xf32> -> vector<16x128xf32>
      %cst_28 = arith.constant 1.06140542 : f32
      %54 = vector.broadcast %cst_28 : f32 to vector<16x128xf32>
      %55 = arith.mulf %54, %53 : vector<16x128xf32>
      %cst_29 = arith.constant -1.45315206 : f32
      %56 = vector.broadcast %cst_29 : f32 to vector<16x128xf32>
      %57 = arith.addf %55, %56 : vector<16x128xf32>
      %58 = arith.mulf %57, %53 : vector<16x128xf32>
      %cst_30 = arith.constant 1.42141378 : f32
      %59 = vector.broadcast %cst_30 : f32 to vector<16x128xf32>
      %60 = arith.addf %58, %59 : vector<16x128xf32>
      %61 = arith.mulf %60, %53 : vector<16x128xf32>
      %cst_31 = arith.constant -0.284496725 : f32
      %62 = vector.broadcast %cst_31 : f32 to vector<16x128xf32>
      %63 = arith.addf %61, %62 : vector<16x128xf32>
      %64 = arith.mulf %63, %53 : vector<16x128xf32>
      %cst_32 = arith.constant 0.254829586 : f32
      %65 = vector.broadcast %cst_32 : f32 to vector<16x128xf32>
      %66 = arith.addf %64, %65 : vector<16x128xf32>
      %67 = arith.mulf %66, %53 : vector<16x128xf32>
      %cst_33 = arith.constant 0.000000e+00 : f32
      %68 = vector.broadcast %cst_33 : f32 to vector<16x128xf32>
      %69 = arith.subf %68, %48 : vector<16x128xf32>
      %70 = arith.mulf %69, %48 : vector<16x128xf32>
      %71 = math.exp %70 : vector<16x128xf32>
      %72 = arith.mulf %67, %71 : vector<16x128xf32>
      %cst_34 = arith.constant 1.000000e+00 : f32
      %73 = vector.broadcast %cst_34 : f32 to vector<16x128xf32>
      %74 = arith.subf %73, %72 : vector<16x128xf32>
      %cst_35 = arith.constant 0.000000e+00 : f32
      %75 = vector.broadcast %cst_35 : f32 to vector<16x128xf32>
      %76 = arith.cmpf olt, %47, %75 : vector<16x128xf32>
      %cst_36 = arith.constant 0.000000e+00 : f32
      %77 = vector.broadcast %cst_36 : f32 to vector<16x128xf32>
      %78 = arith.subf %77, %74 : vector<16x128xf32>
      %79 = arith.select %76, %78, %74 : vector<16x128xi1>, vector<16x128xf32>
      %cst_37 = arith.constant 1.000000e+00 : f32
      %80 = vector.broadcast %cst_37 : f32 to vector<16x128xf32>
      %81 = arith.addf %80, %79 : vector<16x128xf32>
      %82 = arith.mulf %45, %81 : vector<16x128xf32>
      %83 = arith.truncf %82 : vector<16x128xf32> to vector<16x128xbf16>
      %c0_38 = arith.constant 0 : index
      %c0_39 = arith.constant 0 : index
      %84 = vector.load %arg8[%c0_38, %c0_39] : memref<16x128xbf16, #tpu.memory_space<vmem>>, vector<16x128xbf16>
      tpu.vector_store %arg8[%c0_38, %c0_39], %83 {strides = array<i32>} : memref<16x128xbf16, #tpu.memory_space<vmem>>, vector<16x128xbf16>,
    } else {
    }
    return
  }
  func.func @transform_0(%arg0: i32, %arg1: i32, %arg2: i32) -> (i32, i32) {
    %c0_i32 = arith.constant 0 : i32
    return %arg0, %arg2 : i32, i32
  }
  func.func @transform_1(%arg0: i32, %arg1: i32, %arg2: i32) -> (i32, i32) {
    %c0_i32 = arith.constant 0 : i32
    return %arg2, %arg1 : i32, i32
  }
  func.func @transform_2(%arg0: i32, %arg1: i32, %arg2: i32) -> (i32, i32) {
    %c0_i32 = arith.constant 0 : i32
    %c0_i32_0 = arith.constant 0 : i32
    return %c0_i32, %arg1 : i32, i32
  }
  func.func @transform_3(%arg0: i32, %arg1: i32, %arg2: i32) -> (i32, i32) {
    %c0_i32 = arith.constant 0 : i32
    %c0_i32_0 = arith.constant 0 : i32
    return %c0_i32, %arg2 : i32, i32
  }
  func.func @transform_4(%arg0: i32, %arg1: i32, %arg2: i32) -> (i32, i32) {
    %c0_i32 = arith.constant 0 : i32
    %c0_i32_0 = arith.constant 0 : i32
    return %c0_i32, %arg2 : i32, i32
  }
  func.func @transform_5(%arg0: i32, %arg1: i32, %arg2: i32) -> (i32, i32) {
    %c0_i32 = arith.constant 0 : i32
    return %arg0, %arg1 : i32, i32
  }
}

module attributes {stable_mosaic.version = 11 : i64} {
  func.func @_mm_kernel(%arg0: i32, %arg1: i32, %arg2: i32, %arg3: memref<16x128xbf16, #tpu.memory_space<vmem>>, %arg4: memref<128x128xbf16, #tpu.memory_space<vmem>>, %arg5: memref<1x128xf32, #tpu.memory_space<vmem>>, %arg6: memref<1x128xf32, #tpu.memory_space<vmem>>, %arg7: memref<1x128xf32, #tpu.memory_space<vmem>>, %arg8: memref<16x128xf32, #tpu.memory_space<vmem>>, %arg9: memref<16x128xf32, #tpu.memory_space<vmem>>) attributes {dimension_semantics = [#tpu.dimension_semantics<parallel>, #tpu.dimension_semantics<parallel>, #tpu.dimension_semantics<arbitrary>], iteration_bounds = array<i64: 1, 1, 1>, scalar_prefetch = 0 : i64, scratch_operands = 1 : i64, tpu.core_type = #tpu.core_type<tc>, window_params = [{transform_indices = @transform_0, window_bounds = array<i64: 16, 128>}, {transform_indices = @transform_1, window_bounds = array<i64: 128, 128>}, {transform_indices = @transform_2, window_bounds = array<i64: 1, 128>}, {transform_indices = @transform_3, window_bounds = array<i64: 1, 128>}, {transform_indices = @transform_4, window_bounds = array<i64: 1, 128>}, {transform_indices = @transform_5, window_bounds = array<i64: 16, 128>}]} {
    %c0_i32 = arith.constant 0 : i32
    %0 = arith.cmpi eq, %arg2, %c0_i32 : i32
    %1 = arith.extui %0 : i1 to i32
    %c0_i32_0 = arith.constant 0 : i32
    %2 = arith.cmpi ne, %1, %c0_i32_0 : i32
    scf.if %2 {
      %cst_20 = arith.constant 0.000000e+00 : f32
      %40 = vector.broadcast %cst_20 : f32 to vector<16x128xf32>
      %c0_21 = arith.constant 0 : index
      %c0_22 = arith.constant 0 : index
      %41 = vector.load %arg9[%c0_21, %c0_22] : memref<16x128xf32, #tpu.memory_space<vmem>>, vector<16x128xf32>
      tpu.vector_store %arg9[%c0_21, %c0_22], %40 {strides = array<i32>} : memref<16x128xf32, #tpu.memory_space<vmem>>, vector<16x128xf32>,
    } else {
    }
    %c0 = arith.constant 0 : index
    %c0_1 = arith.constant 0 : index
    %3 = vector.load %arg3[%c0, %c0_1] : memref<16x128xbf16, #tpu.memory_space<vmem>>, vector<16x128xbf16>
    %4 = arith.extf %3 : vector<16x128xbf16> to vector<16x128xf32>
    %cst = arith.constant dense<0.000000e+00> : vector<16xf32>
    %5 = vector.multi_reduction <add>, %4, %cst [1] : vector<16x128xf32> to vector<16xf32>
    %6 = vector.shape_cast %5 : vector<16xf32> to vector<16x1xf32>
    %cst_2 = arith.constant 3.125000e-02 : f32
    %7 = vector.broadcast %cst_2 : f32 to vector<16x1xf32>
    %8 = arith.mulf %6, %7 : vector<16x1xf32>
    %9 = arith.mulf %4, %4 : vector<16x128xf32>
    %cst_3 = arith.constant dense<0.000000e+00> : vector<16xf32>
    %10 = vector.multi_reduction <add>, %9, %cst_3 [1] : vector<16x128xf32> to vector<16xf32>
    %11 = vector.shape_cast %10 : vector<16xf32> to vector<16x1xf32>
    %cst_4 = arith.constant 3.125000e-02 : f32
    %12 = vector.broadcast %cst_4 : f32 to vector<16x1xf32>
    %13 = arith.mulf %11, %12 : vector<16x1xf32>
    %14 = arith.mulf %8, %8 : vector<16x1xf32>
    %15 = arith.subf %13, %14 : vector<16x1xf32>
    %cst_5 = arith.constant 0.000000e+00 : f32
    %16 = vector.broadcast %cst_5 : f32 to vector<16x1xf32>
    %17 = arith.maximumf %15, %16 : vector<16x1xf32>
    %18 = vector.broadcast %8 : vector<16x1xf32> to vector<16x128xf32>
    %19 = arith.subf %4, %18 : vector<16x128xf32>
    %cst_6 = arith.constant 9.99999997E-7 : f32
    %20 = vector.broadcast %cst_6 : f32 to vector<16x1xf32>
    %21 = arith.addf %17, %20 : vector<16x1xf32>
    %22 = math.rsqrt %21 : vector<16x1xf32>
    %23 = vector.broadcast %22 : vector<16x1xf32> to vector<16x128xf32>
    %24 = arith.mulf %19, %23 : vector<16x128xf32>
    %c0_7 = arith.constant 0 : index
    %c0_8 = arith.constant 0 : index
    %25 = vector.load %arg6[%c0_7, %c0_8] : memref<1x128xf32, #tpu.memory_space<vmem>>, vector<1x128xf32>
    %26 = vector.broadcast %25 : vector<1x128xf32> to vector<16x128xf32>
    %27 = arith.mulf %24, %26 : vector<16x128xf32>
    %c0_9 = arith.constant 0 : index
    %c0_10 = arith.constant 0 : index
    %28 = vector.load %arg7[%c0_9, %c0_10] : memref<1x128xf32, #tpu.memory_space<vmem>>, vector<1x128xf32>
    %29 = vector.broadcast %28 : vector<1x128xf32> to vector<16x128xf32>
    %30 = arith.addf %27, %29 : vector<16x128xf32>
    %31 = arith.truncf %30 : vector<16x128xf32> to vector<16x128xbf16>
    %c0_11 = arith.constant 0 : index
    %c0_12 = arith.constant 0 : index
    %32 = vector.load %arg9[%c0_11, %c0_12] : memref<16x128xf32, #tpu.memory_space<vmem>>, vector<16x128xf32>
    %c0_13 = arith.constant 0 : index
    %c0_14 = arith.constant 0 : index
    %33 = vector.load %arg4[%c0_13, %c0_14] : memref<128x128xbf16, #tpu.memory_space<vmem>>, vector<128x128xbf16>
    %cst_15 = arith.constant dense<0.000000e+00> : vector<16x128xf32>
    %34 = tpu.matmul %31, %33, %cst_15 {dimension_numbers = #tpu.dot_dimension_numbers<[1], [0], [0], [1], [0, 0, 1, 1], [], []>} : vector<16x128xbf16>, vector<128x128xbf16>, vector<16x128xf32> -> vector<16x128xf32>
    %35 = arith.addf %32, %34 : vector<16x128xf32>
    %c0_16 = arith.constant 0 : index
    %c0_17 = arith.constant 0 : index
    %36 = vector.load %arg9[%c0_16, %c0_17] : memref<16x128xf32, #tpu.memory_space<vmem>>, vector<16x128xf32>
    tpu.vector_store %arg9[%c0_16, %c0_17], %35 {strides = array<i32>} : memref<16x128xf32, #tpu.memory_space<vmem>>, vector<16x128xf32>,
    %c0_i32_18 = arith.constant 0 : i32
    %37 = arith.cmpi eq, %arg2, %c0_i32_18 : i32
    %38 = arith.extui %37 : i1 to i32
    %c0_i32_19 = arith.constant 0 : i32
    %39 = arith.cmpi ne, %38, %c0_i32_19 : i32
    scf.if %39 {
      %c0_20 = arith.constant 0 : index
      %c0_21 = arith.constant 0 : index
      %40 = vector.load %arg9[%c0_20, %c0_21] : memref<16x128xf32, #tpu.memory_space<vmem>>, vector<16x128xf32>
      %c0_22 = arith.constant 0 : index
      %c0_23 = arith.constant 0 : index
      %41 = vector.load %arg5[%c0_22, %c0_23] : memref<1x128xf32, #tpu.memory_space<vmem>>, vector<1x128xf32>
      %42 = vector.broadcast %41 : vector<1x128xf32> to vector<16x128xf32>
      %43 = arith.addf %40, %42 : vector<16x128xf32>
      %c0_24 = arith.constant 0 : index
      %c0_25 = arith.constant 0 : index
      %44 = vector.load %arg8[%c0_24, %c0_25] : memref<16x128xf32, #tpu.memory_space<vmem>>, vector<16x128xf32>
      tpu.vector_store %arg8[%c0_24, %c0_25], %43 {strides = array<i32>} : memref<16x128xf32, #tpu.memory_space<vmem>>, vector<16x128xf32>,
    } else {
    }
    return
  }
  func.func @transform_0(%arg0: i32, %arg1: i32, %arg2: i32) -> (i32, i32) {
    %c0_i32 = arith.constant 0 : i32
    return %arg0, %arg2 : i32, i32
  }
  func.func @transform_1(%arg0: i32, %arg1: i32, %arg2: i32) -> (i32, i32) {
    %c0_i32 = arith.constant 0 : i32
    return %arg2, %arg1 : i32, i32
  }
  func.func @transform_2(%arg0: i32, %arg1: i32, %arg2: i32) -> (i32, i32) {
    %c0_i32 = arith.constant 0 : i32
    %c0_i32_0 = arith.constant 0 : i32
    return %c0_i32, %arg1 : i32, i32
  }
  func.func @transform_3(%arg0: i32, %arg1: i32, %arg2: i32) -> (i32, i32) {
    %c0_i32 = arith.constant 0 : i32
    %c0_i32_0 = arith.constant 0 : i32
    return %c0_i32, %arg2 : i32, i32
  }
  func.func @transform_4(%arg0: i32, %arg1: i32, %arg2: i32) -> (i32, i32) {
    %c0_i32 = arith.constant 0 : i32
    %c0_i32_0 = arith.constant 0 : i32
    return %c0_i32, %arg2 : i32, i32
  }
  func.func @transform_5(%arg0: i32, %arg1: i32, %arg2: i32) -> (i32, i32) {
    %c0_i32 = arith.constant 0 : i32
    return %arg0, %arg1 : i32, i32
  }
}

</mosaic_0001>

<llo_original>
// kernel: _lambda_.13
$region0: #{_lambda_.13}
  #allocation0 [shape = 'u32[]', space=smem, size = 0x4, offset = 0x4, fixed_abs, tag = 'smem constant byte address 0x4 - core index']
  #allocation1 [shape = 'u32[144,128]{1,0:T(1,128)}', space=vmem, size = 0x12000, scoped, tag = 'internal scratch']
  #allocation2 [shape = 'f32[16,128]{1,0:T(8,128)}', space=vmem, size = 0x2000, scoped, tag = 'scratch operand']
  %s0 = inlined_call_operand.vmem [shape: bf16[16,128], index: 0, kind: input, shape index: {}]
  %s1 = inlined_call_operand.vmem [shape: bf16[128,128], index: 1, kind: input, shape index: {}]
  %s2 = inlined_call_operand.vmem [shape: f32[1,128], index: 2, kind: input, shape index: {}]
  %s3 = inlined_call_operand.vmem [shape: f32[1,128], index: 3, kind: input, shape index: {}]
  %s4 = inlined_call_operand.vmem [shape: f32[1,128], index: 4, kind: input, shape index: {}]
  %s5 = inlined_call_operand.vmem [shape: bf16[16,128], index: 5, kind: output, shape index: {}]
  %s6 = sld [smem:[#allocation0]]
  $region38: #{_lambda_.13} parent=0
    _
  %s8 = ssub.s32 1, %s6
  %s9 = scalar_select 0, %s8, %s6
  // Predicated region
  $region2: #{_lambda_.13} parent=0 // pred_check
    _
  $region3: #{_lambda_.13} parent=0 // pred_check_branch
    %11 = sbr.rel (0) target = $region5
  $region4: #{_lambda_.13} parent=0 // pred_region
    _
  $region5: #{_lambda_.13} parent=0 // pred_fallthru
    _
  // Predicated region
  $region6: #{_lambda_.13} parent=0 // pred_check
    _
  $region7: #{_lambda_.13} parent=0 // pred_check_branch
    %13 = sbr.rel (0) target = $region9
  $region8: #{_lambda_.13} parent=0 // pred_region
    _
  $region9: #{_lambda_.13} parent=0 // pred_fallthru
    _
  // Predicated region
  $region10: #{_lambda_.13} parent=0 // pred_check
    _
  $region11: #{_lambda_.13} parent=0 // pred_check_branch
    %15 = sbr.rel (0) target = $region13
  $region12: #{_lambda_.13} parent=0 // pred_region
    _
  $region13: #{_lambda_.13} parent=0 // pred_fallthru
    _
  // Predicated region
  $region14: #{_lambda_.13} parent=0 // pred_check
    _
  $region15: #{_lambda_.13} parent=0 // pred_check_branch
    %17 = sbr.rel (0) target = $region17
  $region16: #{_lambda_.13} parent=0 // pred_region
    _
  $region17: #{_lambda_.13} parent=0 // pred_fallthru
    _
  // Predicated region
  $region18: #{_lambda_.13} parent=0 // pred_check
    _
  $region19: #{_lambda_.13} parent=0 // pred_check_branch
    %19 = sbr.rel (0) target = $region21
  $region20: #{_lambda_.13} parent=0 // pred_region
    _
  $region21: #{_lambda_.13} parent=0 // pred_fallthru
    _
  %p21 = scmp.eq.s32.totalorder 0, 0
  // Predicated region
  $region22: #{_lambda_.13} parent=0 // pred_check
    %p22 = pneg %p21
  $region23: #{_lambda_.13} parent=0 // pred_check_branch
    %24 = sbr.rel (%p22) target = $region25
  $region24: #{_lambda_.13} parent=0 // pred_region
    %25 = vst [vmem:[#allocation2] sm:$0xff] 0.0
    %26 = vst [vmem:[#allocation2 + $0x8] sm:$0xff] 0.0
  $region25: #{_lambda_.13} parent=0 // pred_fallthru
    _
  %v27 = vld [vmem:[%s0] sm:$0xf]
  %v28 = vld [vmem:[%s0 + $0x4] sm:$0xf]
  %v29 = vunpack.c.l.bf16 %v27
  %v30 = vunpack.c.l.bf16 %v28
  %31 = vadd.xlane.f32.xlu0 %v29
  %v32 = vpop.xlane.xlu0 %31
  %33 = vadd.xlane.f32.xlu0 %v30
  %v34 = vpop.xlane.xlu0 %33
  %v35 = vmul.f32 %v32, 0.03125
  %v36 = vmul.f32 %v34, 0.03125
  %v37 = vmul.f32 %v29, %v29
  %v38 = vmul.f32 %v30, %v30
  %39 = vadd.xlane.f32.xlu0 %v37
  %v40 = vpop.xlane.xlu0 %39
  %41 = vadd.xlane.f32.xlu0 %v38
  %v42 = vpop.xlane.xlu0 %41
  %v43 = vmul.f32 %v40, 0.03125
  %v44 = vmul.f32 %v42, 0.03125
  %v45 = vmul.f32 %v35, %v35
  %v46 = vmul.f32 %v36, %v36
  %v47 = vsub.f32 %v43, %v45
  %v48 = vsub.f32 %v44, %v46
  %v49 = vmax.f32 %v47, 0.0
  %v50 = vmax.f32 %v48, 0.0
  %v51 = vsub.f32 %v29, %v35
  %v52 = vsub.f32 %v30, %v36
  %v53 = vadd.f32 %v49, 1e-06
  %v54 = vadd.f32 %v50, 1e-06
  %v55 = vrsqrt.pop %v53
  %v56 = vrsqrt.pop %v54
  %v57 = vmul.f32 %v51, %v55
  %v58 = vmul.f32 %v52, %v56
  %v59 = vld [vmem:[%s3] sm:$0x1]
  %v61 = vlaneseq
  %v62 = vshrl.u32 %v61, 7
  %v63 = vsub.s32 0, %v62
  %v64 = vrot.slane %v59, %v63
  %v66 = vmul.f32 %v57, %v64
  %v67 = vmul.f32 %v58, %v64
  %v68 = vld [vmem:[%s4] sm:$0x1]
  %v70 = vlaneseq
  %v71 = vshrl.u32 %v70, 7
  %v72 = vsub.s32 0, %v71
  %v73 = vrot.slane %v68, %v72
  %v75 = vadd.f32 %v66, %v73
  %v76 = vadd.f32 %v67, %v73
  %v77 = vpack.c.bf16 %v76, %v75
  %v78 = vld [vmem:[#allocation2] sm:$0xff]
  %v79 = vld [vmem:[#allocation2 + $0x8] sm:$0xff]
  %v80 = vld [vmem:[%s1] sm:$0xf]
  %v81 = vld [vmem:[%s1 + $0x4] sm:$0xf]
  %v82 = vld [vmem:[%s1 + $0x8] sm:$0xf]
  %v83 = vld [vmem:[%s1 + $0xc] sm:$0xf]
  %v84 = vld [vmem:[%s1 + $0x10] sm:$0xf]
  %v85 = vld [vmem:[%s1 + $0x14] sm:$0xf]
  %v86 = vld [vmem:[%s1 + $0x18] sm:$0xf]
  %v87 = vld [vmem:[%s1 + $0x1c] sm:$0xf]
  %v88 = vld [vmem:[%s1 + $0x20] sm:$0xf]
  %v89 = vld [vmem:[%s1 + $0x24] sm:$0xf]
  %v90 = vld [vmem:[%s1 + $0x28] sm:$0xf]
  %v91 = vld [vmem:[%s1 + $0x2c] sm:$0xf]
  %v92 = vld [vmem:[%s1 + $0x30] sm:$0xf]
  %v93 = vld [vmem:[%s1 + $0x34] sm:$0xf]
  %v94 = vld [vmem:[%s1 + $0x38] sm:$0xf]
  %v95 = vld [vmem:[%s1 + $0x3c] sm:$0xf]
  %v112 = vunpack.c.l.b16 %v80
  %v113 = vunpack.c.l.b16 %v81
  %v114 = vunpack.c.l.b16 %v82
  %v115 = vunpack.c.l.b16 %v83
  %v116 = vunpack.c.l.b16 %v84
  %v117 = vunpack.c.l.b16 %v85
  %v118 = vunpack.c.l.b16 %v86
  %v119 = vunpack.c.l.b16 %v87
  %v120 = vunpack.c.l.b16 %v88
  %v121 = vunpack.c.l.b16 %v89
  %v122 = vunpack.c.l.b16 %v90
  %v123 = vunpack.c.l.b16 %v91
  %v124 = vunpack.c.l.b16 %v92
  %v125 = vunpack.c.l.b16 %v93
  %v126 = vunpack.c.l.b16 %v94
  %v127 = vunpack.c.l.b16 %v95
  %v128 = vpack.c.b16 %v113, %v112
  %v129 = vpack.c.b16 %v115, %v114
  %v130 = vpack.c.b16 %v117, %v116
  %v131 = vpack.c.b16 %v119, %v118
  %v132 = vpack.c.b16 %v121, %v120
  %v133 = vpack.c.b16 %v123, %v122
  %v134 = vpack.c.b16 %v125, %v124
  %v135 = vpack.c.b16 %v127, %v126
  %144 = vmatprep.subr.bf16.mxu0 0
  %145 = vmatpush1.bf16.msra.mxu0 %v135
  %146 = vmatprep.subr.bf16.mxu0 0
  %147 = vmatpush1.bf16.msra.mxu0 %v134
  %148 = vmatprep.subr.bf16.mxu0 0
  %149 = vmatpush1.bf16.msra.mxu0 %v133
  %150 = vmatprep.subr.bf16.mxu0 0
  %151 = vmatpush1.bf16.msra.mxu0 %v132
  %152 = vmatprep.subr.bf16.mxu0 0
  %153 = vmatpush1.bf16.msra.mxu0 %v131
  %154 = vmatprep.subr.bf16.mxu0 0
  %155 = vmatpush1.bf16.msra.mxu0 %v130
  %156 = vmatprep.subr.bf16.mxu0 0
  %157 = vmatpush1.bf16.msra.mxu0 %v129
  %158 = vmatprep.subr.bf16.mxu0 0
  %159 = vmatpush1.bf16.msra.mxu0 %v128
  %160 = vmatprep.subr.bf16.mxu0 0
  %161 = vmatpush2.bf16.msra.mxu0 0
  %162 = vmatprep.subr.bf16.mxu0 0
  %163 = vmatpush2.bf16.msra.mxu0 0
  %164 = vmatprep.subr.bf16.mxu0 0
  %165 = vmatpush2.bf16.msra.mxu0 0
  %166 = vmatprep.subr.bf16.mxu0 0
  %167 = vmatpush2.bf16.msra.mxu0 0
  %168 = vmatprep.subr.bf16.mxu0 0
  %169 = vmatpush2.bf16.msra.mxu0 0
  %170 = vmatprep.subr.bf16.mxu0 0
  %171 = vmatpush2.bf16.msra.mxu0 0
  %172 = vmatprep.subr.bf16.mxu0 0
  %173 = vmatpush2.bf16.msra.mxu0 0
  %174 = vmatprep.subr.bf16.mxu0 0
  %175 = vmatpush2.bf16.msra.mxu0 0
  %176 = vmatprep.mubr.bf16.mxu0 0
  %177 = vmatmul.mubr.bf16.gmra.mxu0 %v77
  %v178 = vpop.f32.mrf.mxu0
  %v179 = vadd.f32 0.0, %v178
  %v180 = vpop.f32.mrf.mxu0
  %v181 = vpop.f32.mrf.mxu0
  %v182 = vadd.f32 0.0, %v181
  %v183 = vpop.f32.mrf.mxu0
  %184 = vdwg.mxu0
  %v185 = vadd.f32 %v78, %v179
  %v186 = vadd.f32 %v79, %v182
  %187 = vst [vmem:[#allocation2] sm:$0xff] %v185
  %188 = vst [vmem:[#allocation2 + $0x8] sm:$0xff] %v186
  // Predicated region
  $region26: #{_lambda_.13} parent=0 // pred_check
    %p189 = pneg %p21
  $region27: #{_lambda_.13} parent=0 // pred_check_branch
    %191 = sbr.rel (%p189) target = $region29
  $region28: #{_lambda_.13} parent=0 // pred_region
    %v192 = vld [vmem:[#allocation2] sm:$0xff]
    %v193 = vld [vmem:[#allocation2 + $0x8] sm:$0xff]
    %v194 = vld [vmem:[%s2] sm:$0x1]
    %v196 = vlaneseq
    %v197 = vshrl.u32 %v196, 7
    %v198 = vsub.s32 0, %v197
    %v199 = vrot.slane %v194, %v198
    %v201 = vadd.f32 %v192, %v199
    %v202 = vadd.f32 %v193, %v199
    %v203 = vpack.c.bf16 %v202, %v201
    %v205 = vunpack.c.l.b16 %v203
    %v206 = vunpack.c.h.b16 %v203
    %v207 = vpack.c.b16 %v205, %v205
    %v208 = vpack.c.b16 %v206, %v206
    %211 = vst [vmem:[%s5] sm:$0xf] %v207
    %212 = vst [vmem:[%s5 + $0x4] sm:$0xf] %v208
  $region29: #{_lambda_.13} parent=0 // pred_fallthru
    _
  // Predicated region
  $region30: #{_lambda_.13} parent=0 // pred_check
    _
  $region31: #{_lambda_.13} parent=0 // pred_check_branch
    %214 = sbr.rel (0) target = $region33
  $region32: #{_lambda_.13} parent=0 // pred_region
    _
  $region33: #{_lambda_.13} parent=0 // pred_fallthru
    _
  // Predicated region
  $region34: #{_lambda_.13} parent=0 // pred_check
    _
  $region35: #{_lambda_.13} parent=0 // pred_check_branch
    %216 = sbr.rel (0) target = $region37
  $region36: #{_lambda_.13} parent=0 // pred_region
    _
  $region37: #{_lambda_.13} parent=0 // pred_fallthru
    _

// kernel: _lambda_.12
$region0: #{_lambda_.12}
  #allocation0 [shape = 'u32[]', space=smem, size = 0x4, offset = 0x4, fixed_abs, tag = 'smem constant byte address 0x4 - core index']
  #allocation1 [shape = 'u32[144,128]{1,0:T(1,128)}', space=vmem, size = 0x12000, scoped, tag = 'internal scratch']
  #allocation2 [shape = 'f32[16,128]{1,0:T(8,128)}', space=vmem, size = 0x2000, scoped, tag = 'scratch operand']
  %s0 = inlined_call_operand.vmem [shape: bf16[16,256], index: 0, kind: input, shape index: {}]
  %s1 = inlined_call_operand.vmem [shape: bf16[256,128], index: 1, kind: input, shape index: {}]
  %s2 = inlined_call_operand.vmem [shape: f32[1,128], index: 2, kind: input, shape index: {}]
  %s3 = inlined_call_operand.vmem [shape: bf16[16,128], index: 3, kind: output, shape index: {}]
  %s4 = sld [smem:[#allocation0]]
  $region30: #{_lambda_.12} parent=0
    _
  %s6 = ssub.s32 1, %s4
  %s7 = scalar_select 0, %s6, %s4
  // Predicated region
  $region2: #{_lambda_.12} parent=0 // pred_check
    _
  $region3: #{_lambda_.12} parent=0 // pred_check_branch
    %9 = sbr.rel (0) target = $region5
  $region4: #{_lambda_.12} parent=0 // pred_region
    _
  $region5: #{_lambda_.12} parent=0 // pred_fallthru
    _
  // Predicated region
  $region6: #{_lambda_.12} parent=0 // pred_check
    _
  $region7: #{_lambda_.12} parent=0 // pred_check_branch
    %11 = sbr.rel (0) target = $region9
  $region8: #{_lambda_.12} parent=0 // pred_region
    _
  $region9: #{_lambda_.12} parent=0 // pred_fallthru
    _
  // Predicated region
  $region10: #{_lambda_.12} parent=0 // pred_check
    _
  $region11: #{_lambda_.12} parent=0 // pred_check_branch
    %13 = sbr.rel (0) target = $region13
  $region12: #{_lambda_.12} parent=0 // pred_region
    _
  $region13: #{_lambda_.12} parent=0 // pred_fallthru
    _
  %p15 = scmp.eq.s32.totalorder 0, 0
  // Predicated region
  $region14: #{_lambda_.12} parent=0 // pred_check
    %p16 = pneg %p15
  $region15: #{_lambda_.12} parent=0 // pred_check_branch
    %18 = sbr.rel (%p16) target = $region17
  $region16: #{_lambda_.12} parent=0 // pred_region
    %19 = vst [vmem:[#allocation2] sm:$0xff] 0.0
    %20 = vst [vmem:[#allocation2 + $0x8] sm:$0xff] 0.0
  $region17: #{_lambda_.12} parent=0 // pred_fallthru
    _
  %v21 = vld [vmem:[%s0] sm:$0xff]
  %v22 = vld [vmem:[%s0 + $0x8] sm:$0xff]
  %v23 = vld [vmem:[#allocation2] sm:$0xff]
  %v24 = vld [vmem:[#allocation2 + $0x8] sm:$0xff]
  %v25 = vld [vmem:[%s1] sm:$0xf]
  %v26 = vld [vmem:[%s1 + $0x4] sm:$0xf]
  %v27 = vld [vmem:[%s1 + $0x8] sm:$0xf]
  %v28 = vld [vmem:[%s1 + $0xc] sm:$0xf]
  %v29 = vld [vmem:[%s1 + $0x10] sm:$0xf]
  %v30 = vld [vmem:[%s1 + $0x14] sm:$0xf]
  %v31 = vld [vmem:[%s1 + $0x18] sm:$0xf]
  %v32 = vld [vmem:[%s1 + $0x1c] sm:$0xf]
  %v33 = vld [vmem:[%s1 + $0x20] sm:$0xf]
  %v34 = vld [vmem:[%s1 + $0x24] sm:$0xf]
  %v35 = vld [vmem:[%s1 + $0x28] sm:$0xf]
  %v36 = vld [vmem:[%s1 + $0x2c] sm:$0xf]
  %v37 = vld [vmem:[%s1 + $0x30] sm:$0xf]
  %v38 = vld [vmem:[%s1 + $0x34] sm:$0xf]
  %v39 = vld [vmem:[%s1 + $0x38] sm:$0xf]
  %v40 = vld [vmem:[%s1 + $0x3c] sm:$0xf]
  %v41 = vld [vmem:[%s1 + $0x40] sm:$0xf]
  %v42 = vld [vmem:[%s1 + $0x44] sm:$0xf]
  %v43 = vld [vmem:[%s1 + $0x48] sm:$0xf]
  %v44 = vld [vmem:[%s1 + $0x4c] sm:$0xf]
  %v45 = vld [vmem:[%s1 + $0x50] sm:$0xf]
  %v46 = vld [vmem:[%s1 + $0x54] sm:$0xf]
  %v47 = vld [vmem:[%s1 + $0x58] sm:$0xf]
  %v48 = vld [vmem:[%s1 + $0x5c] sm:$0xf]
  %v49 = vld [vmem:[%s1 + $0x60] sm:$0xf]
  %v50 = vld [vmem:[%s1 + $0x64] sm:$0xf]
  %v51 = vld [vmem:[%s1 + $0x68] sm:$0xf]
  %v52 = vld [vmem:[%s1 + $0x6c] sm:$0xf]
  %v53 = vld [vmem:[%s1 + $0x70] sm:$0xf]
  %v54 = vld [vmem:[%s1 + $0x74] sm:$0xf]
  %v55 = vld [vmem:[%s1 + $0x78] sm:$0xf]
  %v56 = vld [vmem:[%s1 + $0x7c] sm:$0xf]
  %v59 = vunpack.c.l.b16 %v21
  %v60 = vunpack.c.h.b16 %v21
  %v61 = vunpack.c.l.b16 %v22
  %v62 = vunpack.c.h.b16 %v22
  %v63 = vpack.c.b16 %v61, %v59
  %v64 = vpack.c.b16 %v62, %v60
  %v99 = vunpack.c.l.b16 %v25
  %v100 = vunpack.c.l.b16 %v26
  %v101 = vunpack.c.l.b16 %v27
  %v102 = vunpack.c.l.b16 %v28
  %v103 = vunpack.c.l.b16 %v29
  %v104 = vunpack.c.l.b16 %v30
  %v105 = vunpack.c.l.b16 %v31
  %v106 = vunpack.c.l.b16 %v32
  %v107 = vunpack.c.l.b16 %v33
  %v108 = vunpack.c.l.b16 %v34
  %v109 = vunpack.c.l.b16 %v35
  %v110 = vunpack.c.l.b16 %v36
  %v111 = vunpack.c.l.b16 %v37
  %v112 = vunpack.c.l.b16 %v38
  %v113 = vunpack.c.l.b16 %v39
  %v114 = vunpack.c.l.b16 %v40
  %v115 = vunpack.c.l.b16 %v41
  %v116 = vunpack.c.l.b16 %v42
  %v117 = vunpack.c.l.b16 %v43
  %v118 = vunpack.c.l.b16 %v44
  %v119 = vunpack.c.l.b16 %v45
  %v120 = vunpack.c.l.b16 %v46
  %v121 = vunpack.c.l.b16 %v47
  %v122 = vunpack.c.l.b16 %v48
  %v123 = vunpack.c.l.b16 %v49
  %v124 = vunpack.c.l.b16 %v50
  %v125 = vunpack.c.l.b16 %v51
  %v126 = vunpack.c.l.b16 %v52
  %v127 = vunpack.c.l.b16 %v53
  %v128 = vunpack.c.l.b16 %v54
  %v129 = vunpack.c.l.b16 %v55
  %v130 = vunpack.c.l.b16 %v56
  %v131 = vpack.c.b16 %v100, %v99
  %v132 = vpack.c.b16 %v102, %v101
  %v133 = vpack.c.b16 %v104, %v103
  %v134 = vpack.c.b16 %v106, %v105
  %v135 = vpack.c.b16 %v108, %v107
  %v136 = vpack.c.b16 %v110, %v109
  %v137 = vpack.c.b16 %v112, %v111
  %v138 = vpack.c.b16 %v114, %v113
  %v139 = vpack.c.b16 %v116, %v115
  %v140 = vpack.c.b16 %v118, %v117
  %v141 = vpack.c.b16 %v120, %v119
  %v142 = vpack.c.b16 %v122, %v121
  %v143 = vpack.c.b16 %v124, %v123
  %v144 = vpack.c.b16 %v126, %v125
  %v145 = vpack.c.b16 %v128, %v127
  %v146 = vpack.c.b16 %v130, %v129
  %163 = vmatprep.subr.bf16.mxu0 0
  %164 = vmatpush1.bf16.msra.mxu0 %v138
  %165 = vmatprep.subr.bf16.mxu0 0
  %166 = vmatpush1.bf16.msra.mxu0 %v137
  %167 = vmatprep.subr.bf16.mxu0 0
  %168 = vmatpush1.bf16.msra.mxu0 %v136
  %169 = vmatprep.subr.bf16.mxu0 0
  %170 = vmatpush1.bf16.msra.mxu0 %v135
  %171 = vmatprep.subr.bf16.mxu0 0
  %172 = vmatpush1.bf16.msra.mxu0 %v134
  %173 = vmatprep.subr.bf16.mxu0 0
  %174 = vmatpush1.bf16.msra.mxu0 %v133
  %175 = vmatprep.subr.bf16.mxu0 0
  %176 = vmatpush1.bf16.msra.mxu0 %v132
  %177 = vmatprep.subr.bf16.mxu0 0
  %178 = vmatpush1.bf16.msra.mxu0 %v131
  %179 = vmatprep.subr.bf16.mxu0 0
  %180 = vmatpush2.bf16.msra.mxu0 %v146
  %181 = vmatprep.subr.bf16.mxu0 0
  %182 = vmatpush2.bf16.msra.mxu0 %v145
  %183 = vmatprep.subr.bf16.mxu0 0
  %184 = vmatpush2.bf16.msra.mxu0 %v144
  %185 = vmatprep.subr.bf16.mxu0 0
  %186 = vmatpush2.bf16.msra.mxu0 %v143
  %187 = vmatprep.subr.bf16.mxu0 0
  %188 = vmatpush2.bf16.msra.mxu0 %v142
  %189 = vmatprep.subr.bf16.mxu0 0
  %190 = vmatpush2.bf16.msra.mxu0 %v141
  %191 = vmatprep.subr.bf16.mxu0 0
  %192 = vmatpush2.bf16.msra.mxu0 %v140
  %193 = vmatprep.subr.bf16.mxu0 0
  %194 = vmatpush2.bf16.msra.mxu0 %v139
  %195 = vmatprep.mubr.bf16.mxu0 %v64
  %196 = vmatmul.mubr.bf16.gmra.mxu0 %v63
  %v197 = vpop.f32.mrf.mxu0
  %v198 = vadd.f32 0.0, %v197
  %v199 = vpop.f32.mrf.mxu0
  %v200 = vpop.f32.mrf.mxu0
  %v201 = vadd.f32 0.0, %v200
  %v202 = vpop.f32.mrf.mxu0
  %203 = vdwg.mxu0
  %v204 = vadd.f32 %v23, %v198
  %v205 = vadd.f32 %v24, %v201
  %206 = vst [vmem:[#allocation2] sm:$0xff] %v204
  %207 = vst [vmem:[#allocation2 + $0x8] sm:$0xff] %v205
  // Predicated region
  $region18: #{_lambda_.12} parent=0 // pred_check
    %p208 = pneg %p15
  $region19: #{_lambda_.12} parent=0 // pred_check_branch
    %210 = sbr.rel (%p208) target = $region21
  $region20: #{_lambda_.12} parent=0 // pred_region
    %v211 = vld [vmem:[#allocation2] sm:$0xff]
    %v212 = vld [vmem:[#allocation2 + $0x8] sm:$0xff]
    %v213 = vld [vmem:[%s2] sm:$0x1]
    %v215 = vlaneseq
    %v216 = vshrl.u32 %v215, 7
    %v217 = vsub.s32 0, %v216
    %v218 = vrot.slane %v213, %v217
    %v220 = vadd.f32 %v211, %v218
    %v221 = vadd.f32 %v212, %v218
    %v222 = vpack.c.bf16 %v221, %v220
    %v224 = vunpack.c.l.b16 %v222
    %v225 = vunpack.c.h.b16 %v222
    %v226 = vpack.c.b16 %v224, %v224
    %v227 = vpack.c.b16 %v225, %v225
    %230 = vst [vmem:[%s3] sm:$0xf] %v226
    %231 = vst [vmem:[%s3 + $0x4] sm:$0xf] %v227
  $region21: #{_lambda_.12} parent=0 // pred_fallthru
    _
  // Predicated region
  $region22: #{_lambda_.12} parent=0 // pred_check
    _
  $region23: #{_lambda_.12} parent=0 // pred_check_branch
    %233 = sbr.rel (0) target = $region25
  $region24: #{_lambda_.12} parent=0 // pred_region
    _
  $region25: #{_lambda_.12} parent=0 // pred_fallthru
    _
  // Predicated region
  $region26: #{_lambda_.12} parent=0 // pred_check
    _
  $region27: #{_lambda_.12} parent=0 // pred_check_branch
    %235 = sbr.rel (0) target = $region29
  $region28: #{_lambda_.12} parent=0 // pred_region
    _
  $region29: #{_lambda_.12} parent=0 // pred_fallthru
    _

// kernel: _lambda_.15
$region0: #{_lambda_.15}
  #allocation0 [shape = 'u32[]', space=smem, size = 0x4, offset = 0x4, fixed_abs, tag = 'smem constant byte address 0x4 - core index']
  #allocation1 [shape = 'u32[144,128]{1,0:T(1,128)}', space=vmem, size = 0x12000, scoped, tag = 'internal scratch']
  #allocation2 [shape = 'f32[16,128]{1,0:T(8,128)}', space=vmem, size = 0x2000, scoped, tag = 'scratch operand']
  %s0 = inlined_call_operand.vmem [shape: bf16[16,128], index: 0, kind: input, shape index: {}]
  %s1 = inlined_call_operand.vmem [shape: bf16[128,128], index: 1, kind: input, shape index: {}]
  %s2 = inlined_call_operand.vmem [shape: f32[1,128], index: 2, kind: input, shape index: {}]
  %s3 = inlined_call_operand.vmem [shape: bf16[16,128], index: 3, kind: input, shape index: {}]
  %s4 = inlined_call_operand.vmem [shape: bf16[16,128], index: 4, kind: output, shape index: {}]
  %s5 = sld [smem:[#allocation0]]
  $region34: #{_lambda_.15} parent=0
    _
  %s7 = ssub.s32 1, %s5
  %s8 = scalar_select 0, %s7, %s5
  // Predicated region
  $region2: #{_lambda_.15} parent=0 // pred_check
    _
  $region3: #{_lambda_.15} parent=0 // pred_check_branch
    %10 = sbr.rel (0) target = $region5
  $region4: #{_lambda_.15} parent=0 // pred_region
    _
  $region5: #{_lambda_.15} parent=0 // pred_fallthru
    _
  // Predicated region
  $region6: #{_lambda_.15} parent=0 // pred_check
    _
  $region7: #{_lambda_.15} parent=0 // pred_check_branch
    %12 = sbr.rel (0) target = $region9
  $region8: #{_lambda_.15} parent=0 // pred_region
    _
  $region9: #{_lambda_.15} parent=0 // pred_fallthru
    _
  // Predicated region
  $region10: #{_lambda_.15} parent=0 // pred_check
    _
  $region11: #{_lambda_.15} parent=0 // pred_check_branch
    %14 = sbr.rel (0) target = $region13
  $region12: #{_lambda_.15} parent=0 // pred_region
    _
  $region13: #{_lambda_.15} parent=0 // pred_fallthru
    _
  // Predicated region
  $region14: #{_lambda_.15} parent=0 // pred_check
    _
  $region15: #{_lambda_.15} parent=0 // pred_check_branch
    %16 = sbr.rel (0) target = $region17
  $region16: #{_lambda_.15} parent=0 // pred_region
    _
  $region17: #{_lambda_.15} parent=0 // pred_fallthru
    _
  %p18 = scmp.eq.s32.totalorder 0, 0
  // Predicated region
  $region18: #{_lambda_.15} parent=0 // pred_check
    %p19 = pneg %p18
  $region19: #{_lambda_.15} parent=0 // pred_check_branch
    %21 = sbr.rel (%p19) target = $region21
  $region20: #{_lambda_.15} parent=0 // pred_region
    %22 = vst [vmem:[#allocation2] sm:$0xff] 0.0
    %23 = vst [vmem:[#allocation2 + $0x8] sm:$0xff] 0.0
  $region21: #{_lambda_.15} parent=0 // pred_fallthru
    _
  %v24 = vld [vmem:[%s0] sm:$0xf]
  %v25 = vld [vmem:[%s0 + $0x4] sm:$0xf]
  %v26 = vld [vmem:[#allocation2] sm:$0xff]
  %v27 = vld [vmem:[#allocation2 + $0x8] sm:$0xff]
  %v28 = vld [vmem:[%s1] sm:$0xf]
  %v29 = vld [vmem:[%s1 + $0x4] sm:$0xf]
  %v30 = vld [vmem:[%s1 + $0x8] sm:$0xf]
  %v31 = vld [vmem:[%s1 + $0xc] sm:$0xf]
  %v32 = vld [vmem:[%s1 + $0x10] sm:$0xf]
  %v33 = vld [vmem:[%s1 + $0x14] sm:$0xf]
  %v34 = vld [vmem:[%s1 + $0x18] sm:$0xf]
  %v35 = vld [vmem:[%s1 + $0x1c] sm:$0xf]
  %v36 = vld [vmem:[%s1 + $0x20] sm:$0xf]
  %v37 = vld [vmem:[%s1 + $0x24] sm:$0xf]
  %v38 = vld [vmem:[%s1 + $0x28] sm:$0xf]
  %v39 = vld [vmem:[%s1 + $0x2c] sm:$0xf]
  %v40 = vld [vmem:[%s1 + $0x30] sm:$0xf]
  %v41 = vld [vmem:[%s1 + $0x34] sm:$0xf]
  %v42 = vld [vmem:[%s1 + $0x38] sm:$0xf]
  %v43 = vld [vmem:[%s1 + $0x3c] sm:$0xf]
  %v46 = vunpack.c.l.b16 %v24
  %v47 = vunpack.c.l.b16 %v25
  %v48 = vpack.c.b16 %v47, %v46
  %v66 = vunpack.c.l.b16 %v28
  %v67 = vunpack.c.l.b16 %v29
  %v68 = vunpack.c.l.b16 %v30
  %v69 = vunpack.c.l.b16 %v31
  %v70 = vunpack.c.l.b16 %v32
  %v71 = vunpack.c.l.b16 %v33
  %v72 = vunpack.c.l.b16 %v34
  %v73 = vunpack.c.l.b16 %v35
  %v74 = vunpack.c.l.b16 %v36
  %v75 = vunpack.c.l.b16 %v37
  %v76 = vunpack.c.l.b16 %v38
  %v77 = vunpack.c.l.b16 %v39
  %v78 = vunpack.c.l.b16 %v40
  %v79 = vunpack.c.l.b16 %v41
  %v80 = vunpack.c.l.b16 %v42
  %v81 = vunpack.c.l.b16 %v43
  %v82 = vpack.c.b16 %v67, %v66
  %v83 = vpack.c.b16 %v69, %v68
  %v84 = vpack.c.b16 %v71, %v70
  %v85 = vpack.c.b16 %v73, %v72
  %v86 = vpack.c.b16 %v75, %v74
  %v87 = vpack.c.b16 %v77, %v76
  %v88 = vpack.c.b16 %v79, %v78
  %v89 = vpack.c.b16 %v81, %v80
  %98 = vmatprep.subr.bf16.mxu0 0
  %99 = vmatpush1.bf16.msra.mxu0 %v89
  %100 = vmatprep.subr.bf16.mxu0 0
  %101 = vmatpush1.bf16.msra.mxu0 %v88
  %102 = vmatprep.subr.bf16.mxu0 0
  %103 = vmatpush1.bf16.msra.mxu0 %v87
  %104 = vmatprep.subr.bf16.mxu0 0
  %105 = vmatpush1.bf16.msra.mxu0 %v86
  %106 = vmatprep.subr.bf16.mxu0 0
  %107 = vmatpush1.bf16.msra.mxu0 %v85
  %108 = vmatprep.subr.bf16.mxu0 0
  %109 = vmatpush1.bf16.msra.mxu0 %v84
  %110 = vmatprep.subr.bf16.mxu0 0
  %111 = vmatpush1.bf16.msra.mxu0 %v83
  %112 = vmatprep.subr.bf16.mxu0 0
  %113 = vmatpush1.bf16.msra.mxu0 %v82
  %114 = vmatprep.subr.bf16.mxu0 0
  %115 = vmatpush2.bf16.msra.mxu0 0
  %116 = vmatprep.subr.bf16.mxu0 0
  %117 = vmatpush2.bf16.msra.mxu0 0
  %118 = vmatprep.subr.bf16.mxu0 0
  %119 = vmatpush2.bf16.msra.mxu0 0
  %120 = vmatprep.subr.bf16.mxu0 0
  %121 = vmatpush2.bf16.msra.mxu0 0
  %122 = vmatprep.subr.bf16.mxu0 0
  %123 = vmatpush2.bf16.msra.mxu0 0
  %124 = vmatprep.subr.bf16.mxu0 0
  %125 = vmatpush2.bf16.msra.mxu0 0
  %126 = vmatprep.subr.bf16.mxu0 0
  %127 = vmatpush2.bf16.msra.mxu0 0
  %128 = vmatprep.subr.bf16.mxu0 0
  %129 = vmatpush2.bf16.msra.mxu0 0
  %130 = vmatprep.mubr.bf16.mxu0 0
  %131 = vmatmul.mubr.bf16.gmra.mxu0 %v48
  %v132 = vpop.f32.mrf.mxu0
  %v133 = vadd.f32 0.0, %v132
  %v134 = vpop.f32.mrf.mxu0
  %v135 = vpop.f32.mrf.mxu0
  %v136 = vadd.f32 0.0, %v135
  %v137 = vpop.f32.mrf.mxu0
  %138 = vdwg.mxu0
  %v139 = vadd.f32 %v26, %v133
  %v140 = vadd.f32 %v27, %v136
  %141 = vst [vmem:[#allocation2] sm:$0xff] %v139
  %142 = vst [vmem:[#allocation2 + $0x8] sm:$0xff] %v140
  // Predicated region
  $region22: #{_lambda_.15} parent=0 // pred_check
    %p143 = pneg %p18
  $region23: #{_lambda_.15} parent=0 // pred_check_branch
    %145 = sbr.rel (%p143) target = $region25
  $region24: #{_lambda_.15} parent=0 // pred_region
    %v146 = vld [vmem:[#allocation2] sm:$0xff]
    %v147 = vld [vmem:[#allocation2 + $0x8] sm:$0xff]
    %v148 = vld [vmem:[%s2] sm:$0x1]
    %v150 = vlaneseq
    %v151 = vshrl.u32 %v150, 7
    %v152 = vsub.s32 0, %v151
    %v153 = vrot.slane %v148, %v152
    %v155 = vadd.f32 %v146, %v153
    %v156 = vadd.f32 %v147, %v153
    %v157 = vld [vmem:[%s3] sm:$0xf]
    %v158 = vld [vmem:[%s3 + $0x4] sm:$0xf]
    %v159 = vunpack.c.l.bf16 %v157
    %v160 = vunpack.c.l.bf16 %v158
    %v161 = vadd.f32 %v155, %v159
    %v162 = vadd.f32 %v156, %v160
    %v163 = vpack.c.bf16 %v162, %v161
    %v165 = vunpack.c.l.b16 %v163
    %v166 = vunpack.c.h.b16 %v163
    %v167 = vpack.c.b16 %v165, %v165
    %v168 = vpack.c.b16 %v166, %v166
    %171 = vst [vmem:[%s4] sm:$0xf] %v167
    %172 = vst [vmem:[%s4 + $0x4] sm:$0xf] %v168
  $region25: #{_lambda_.15} parent=0 // pred_fallthru
    _
  // Predicated region
  $region26: #{_lambda_.15} parent=0 // pred_check
    _
  $region27: #{_lambda_.15} parent=0 // pred_check_branch
    %174 = sbr.rel (0) target = $region29
  $region28: #{_lambda_.15} parent=0 // pred_region
    _
  $region29: #{_lambda_.15} parent=0 // pred_fallthru
    _
  // Predicated region
  $region30: #{_lambda_.15} parent=0 // pred_check
    _
  $region31: #{_lambda_.15} parent=0 // pred_check_branch
    %176 = sbr.rel (0) target = $region33
  $region32: #{_lambda_.15} parent=0 // pred_region
    _
  $region33: #{_lambda_.15} parent=0 // pred_fallthru
    _

// kernel: _lambda_.14
$region0: #{_lambda_.14}
  #allocation0 [shape = 'u32[]', space=smem, size = 0x4, offset = 0x4, fixed_abs, tag = 'smem constant byte address 0x4 - core index']
  #allocation1 [shape = 'u32[144,128]{1,0:T(1,128)}', space=vmem, size = 0x12000, scoped, tag = 'internal scratch']
  %s0 = inlined_call_operand.vmem [shape: bf16[2,5,96], index: 0, kind: input, shape index: {}]
  %s1 = inlined_call_operand.vmem [shape: bf16[2,5,32], index: 1, kind: output, shape index: {}]
  %s2 = sld [smem:[#allocation0]]
  $region37: #{_lambda_.14} parent=0
    _
  %s4 = ssub.s32 1, %s2
  %s5 = scalar_select 0, %s4, %s2
  loop: start=0, step=1, limit=4
  $region2: #{_lambda_.14} parent=0 // loop_pre_header
    _
  $region3: #{_lambda_.14} parent=0 // loop_header
    %s7 = sphi 0, %s11
    %p8 = scmp.ge.s32.totalorder %s7, 4
    %s17 = sphi 0, %s19
    %s20 = sphi 0, %s17
    %s21 = sphi 0, %s20
    %s37 = sphi 0, %s21
    %s43 = sphi 0, %s45
    %s46 = sphi 0, %s43
    %s47 = sphi 0, %s46
    %s63 = sphi 0, %s47
  $region4: #{_lambda_.14} parent=0 // loop_header_branch
    %10 = sbr.rel (%p8) target = $region8
  $region5: #{_lambda_.14} parent=0 // loop_body
    %s12 = ssub.s32 %s7, 1
    %s13 = ssub.s32 %s7, 2
    %s14 = sadd.s32 %s7, 1
    %s15 = ssub.s32 %s7, %s14
    %p16 = scmp.eq.s32.totalorder %s15, 0
    %s18 = sadd.s32 %s17, 1
    %s19 = scalar_select %p16, %s17, %s18
    %p22 = pneg %p16
    %p23 = scmp.eq.s32.totalorder %s7, 1
    %p24 = por %p22, %p23
    %p25 = scmp.ne.s32.totalorder %s17, %s20
    %p26 = scmp.eq.s32.totalorder %s7, 0
    %p27 = por %p25, %p26
    %p28 = scmp.ne.s32.totalorder %s17, %s20
    %p29 = scmp.eq.s32.totalorder %s12, 1
    %p30 = por %p28, %p29
    %p31 = scmp.ne.s32.totalorder %s20, %s21
    %p32 = scmp.eq.s32.totalorder %s12, 0
    %p33 = por %p31, %p32
    %p34 = scmp.ne.s32.totalorder %s20, %s21
    %p35 = scmp.eq.s32.totalorder %s13, 1
    %p36 = por %p34, %p35
    %p38 = scmp.ne.s32.totalorder %s21, %s37
    %p39 = scmp.eq.s32.totalorder %s13, 0
    %p40 = por %p38, %p39
    %s41 = ssub.s32 %s7, %s14
    %p42 = scmp.eq.s32.totalorder %s41, 0
    %s44 = sadd.s32 %s43, 1
    %s45 = scalar_select %p42, %s43, %s44
    %p48 = pneg %p42
    %p49 = scmp.eq.s32.totalorder %s7, 1
    %p50 = por %p48, %p49
    %p51 = scmp.ne.s32.totalorder %s43, %s46
    %p52 = scmp.eq.s32.totalorder %s7, 0
    %p53 = por %p51, %p52
    %p54 = scmp.ne.s32.totalorder %s43, %s46
    %p55 = scmp.eq.s32.totalorder %s12, 1
    %p56 = por %p54, %p55
    %p57 = scmp.ne.s32.totalorder %s46, %s47
    %p58 = scmp.eq.s32.totalorder %s12, 0
    %p59 = por %p57, %p58
    %p60 = scmp.ne.s32.totalorder %s46, %s47
    %p61 = scmp.eq.s32.totalorder %s13, 1
    %p62 = por %p60, %p61
    %p64 = scmp.ne.s32.totalorder %s47, %s63
    %p65 = scmp.eq.s32.totalorder %s13, 0
    %p66 = por %p64, %p65
    %p67 = scmp.le.s32.totalorder 1, %s7
    %p68 = scmp.lt.s32.totalorder %s7, 3
    %p69 = pnand %p67, %p68
    %p70 = pneg %p69
    // Predicated region
    $region9: #{_lambda_.14} parent=5 // pred_check
      _
    $region10: #{_lambda_.14} parent=5 // pred_check_branch
      %72 = sbr.rel (%p69) target = $region12
    $region11: #{_lambda_.14} parent=5 // pred_region
      %s73 = ssub.s32 %s7, 1
    $region12: #{_lambda_.14} parent=5 // pred_fallthru
      _
    %p74 = scmp.lt.s32.totalorder %s7, 2
    // Predicated region
    $region13: #{_lambda_.14} parent=5 // pred_check
      %p75 = pneg %p74
    $region14: #{_lambda_.14} parent=5 // pred_check_branch
      %77 = sbr.rel (%p75) target = $region16
    $region15: #{_lambda_.14} parent=5 // pred_region
      // Predicated region
      $region17: #{_lambda_.14} parent=15 // pred_check
        %p78 = pneg %p27
      $region18: #{_lambda_.14} parent=15 // pred_check_branch
        %80 = sbr.rel (%p78) target = $region20
      $region19: #{_lambda_.14} parent=15 // pred_region
        %p81 = scmp.lt.s32.totalorder %s7, 1
        %s82 = scalar_select %p81, %s7, 1
        %s83 = smul.addr %s82, 4
        %s84 = scalar_lea.vmem %s0, %s83
      $region20: #{_lambda_.14} parent=15 // pred_fallthru
        _
    $region16: #{_lambda_.14} parent=5 // pred_fallthru
      _
    %p85 = scmp.le.s32.totalorder 1, %s7
    %p86 = scmp.lt.s32.totalorder %s7, 3
    %p87 = pnand %p85, %p86
    %p88 = pneg %p87
    // Predicated region
    $region21: #{_lambda_.14} parent=5 // pred_check
      _
    $region22: #{_lambda_.14} parent=5 // pred_check_branch
      %90 = sbr.rel (%p87) target = $region24
    $region23: #{_lambda_.14} parent=5 // pred_region
      %s91 = ssub.s32 %s7, 1
      %p92 = scmp.lt.s32.totalorder %s12, 1
      %s93 = scalar_select %p92, %s12, 1
      %s94 = smul.addr %s93, 4
      %s95 = scalar_lea.vmem %s0, %s94
      %p96 = pneg %p33
      %p97 = pneg %p30
      %p98 = pneg %p59
      %p99 = pneg %p56
      %p100 = scmp.lt.s32.totalorder %s12, 1
      %s101 = scalar_select %p100, %s12, 1
      %s102 = smul.addr %s101, 4
      %s103 = scalar_lea.vmem %s1, %s102
      %p104 = scmp.lt.s32.totalorder %s12, 1
      %s105 = scalar_select %p104, %s12, 1
      %s106 = smul.addr %s105, 4
      %s107 = scalar_lea.vmem %s0, %s106
      %p108 = scmp.lt.s32.totalorder %s12, 1
      %s109 = scalar_select %p108, %s12, 1
      %s110 = smul.addr %s109, 4
      %s111 = scalar_lea.vmem %s1, %s110
      %v113 = vld [vmem:[%s107] sm:$0x7]
      %v115 = vunpack.c.l.b16 %v113
      %v116 = vpack.c.b16 %v115, %v115
      %117 = vrot.lane.b32.xlu0 %v116, 96
      %v118 = vpop.permute.xlu0 %117
      %vm119 = vcmask 64512
      %v121 = vsel %vm119, %v113, 0
      %v124 = vsel %vm119, %v118, 0
      %126 = vmatprep.subr.bf16.mxu0 0
      %127 = vmatpush1.bf16.xpose.msra.mxu0 0
      %128 = vmatprep.subr.bf16.mxu0 0
      %129 = vmatpush1.bf16.xpose.msra.mxu0 0
      %130 = vmatprep.subr.bf16.mxu0 0
      %131 = vmatpush1.bf16.xpose.msra.mxu0 0
      %132 = vmatprep.subr.bf16.mxu0 0
      %133 = vmatpush1.bf16.xpose.msra.mxu0 0
      %134 = vmatprep.subr.bf16.mxu0 0
      %135 = vmatpush1.bf16.xpose.msra.mxu0 0
      %136 = vmatprep.subr.bf16.mxu0 0
      %137 = vmatpush1.bf16.xpose.msra.mxu0 0
      %138 = vmatprep.subr.bf16.mxu0 0
      %139 = vmatpush1.bf16.xpose.msra.mxu0 0
      %140 = vmatprep.subr.bf16.mxu0 0
      %141 = vmatpush1.bf16.xpose.msra.mxu0 %v124
      %142 = vmatprep.subr.bf16.mxu0 0
      %143 = vmatpush2.bf16.xpose.msra.mxu0 0
      %144 = vmatprep.subr.bf16.mxu0 0
      %145 = vmatpush2.bf16.xpose.msra.mxu0 0
      %146 = vmatprep.subr.bf16.mxu0 0
      %147 = vmatpush2.bf16.xpose.msra.mxu0 0
      %148 = vmatprep.subr.bf16.mxu0 0
      %149 = vmatpush2.bf16.xpose.msra.mxu0 0
      %150 = vmatprep.subr.bf16.mxu0 0
      %151 = vmatpush2.bf16.xpose.msra.mxu0 0
      %152 = vmatprep.subr.bf16.mxu0 0
      %153 = vmatpush2.bf16.xpose.msra.mxu0 0
      %154 = vmatprep.subr.bf16.mxu0 0
      %155 = vmatpush2.bf16.xpose.msra.mxu0 0
      %156 = vmatprep.subr.bf16.mxu0 0
      %157 = vmatpush2.bf16.xpose.msra.mxu0 0
      %158 = vmatprep.mubr.bf16.mxu0 0
      %159 = vmatmul.mubr.bf16.gmra.mxu0 %v121
      %v160 = vpop.f32.mrf.mxu0
      %v161 = vadd.f32 0.0, %v160
      %v162 = vpop.f32.mrf.mxu0
      %v163 = vpop.f32.mrf.mxu0
      %v164 = vpop.f32.mrf.mxu0
      %165 = vdwg.mxu0
      %v166 = vmul.f32 %v161, 0.35355338
      %vm167 = vcmask 36864
      %v168 = vsel %vm167, %v166, -inf
      %169 = vmax.xlane.f32.xlu0 %v168
      %v170 = vpop.xlane.xlu0 %169
      %v171 = vsub.f32 %v166, %v170
      %v172 = vmul.f32 %v171, 1.442695
      %v173 = vpow.pop %v172
      %v174 = vsel %vm167, %v173, 0.0
      %175 = vadd.xlane.f32.xlu0 %v174
      %v176 = vpop.xlane.xlu0 %175
      %v177 = vrcp.pop %v176
      %v178 = vmul.f32 %v173, %v177
      %v179 = vpack.c.bf16 %v178, %v178
      %180 = vrot.lane.b32.xlu0 %v116, 64
      %v181 = vpop.permute.xlu0 %180
      %vm182 = vcmask 39936
      %v184 = vsel %vm182, %v179, 0
      %vm186 = vcmask 1041408
      %vm187 = vcmask 1042432
      %v188 = vsel %vm186, 4294967295, 65535
      %v189 = vsel %vm187, %v188, 0
      %v191 = vand.u32 %v181, %v189
      %193 = vmatprep.subr.bf16.mxu0 0
      %194 = vmatpush1.bf16.msra.mxu0 0
      %195 = vmatprep.subr.bf16.mxu0 0
      %196 = vmatpush1.bf16.msra.mxu0 0
      %197 = vmatprep.subr.bf16.mxu0 0
      %198 = vmatpush1.bf16.msra.mxu0 0
      %199 = vmatprep.subr.bf16.mxu0 0
      %200 = vmatpush1.bf16.msra.mxu0 0
      %201 = vmatprep.subr.bf16.mxu0 0
      %202 = vmatpush1.bf16.msra.mxu0 0
      %203 = vmatprep.subr.bf16.mxu0 0
      %204 = vmatpush1.bf16.msra.mxu0 0
      %205 = vmatprep.subr.bf16.mxu0 0
      %206 = vmatpush1.bf16.msra.mxu0 0
      %207 = vmatprep.subr.bf16.mxu0 0
      %208 = vmatpush1.bf16.msra.mxu0 %v191
      %209 = vmatprep.subr.bf16.mxu0 0
      %210 = vmatpush2.bf16.msra.mxu0 0
      %211 = vmatprep.subr.bf16.mxu0 0
      %212 = vmatpush2.bf16.msra.mxu0 0
      %213 = vmatprep.subr.bf16.mxu0 0
      %214 = vmatpush2.bf16.msra.mxu0 0
      %215 = vmatprep.subr.bf16.mxu0 0
      %216 = vmatpush2.bf16.msra.mxu0 0
      %217 = vmatprep.subr.bf16.mxu0 0
      %218 = vmatpush2.bf16.msra.mxu0 0
      %219 = vmatprep.subr.bf16.mxu0 0
      %220 = vmatpush2.bf16.msra.mxu0 0
      %221 = vmatprep.subr.bf16.mxu0 0
      %222 = vmatpush2.bf16.msra.mxu0 0
      %223 = vmatprep.subr.bf16.mxu0 0
      %224 = vmatpush2.bf16.msra.mxu0 0
      %225 = vmatprep.mubr.bf16.mxu0 0
      %226 = vmatmul.mubr.bf16.gmra.mxu0 %v184
      %v227 = vpop.f32.mrf.mxu0
      %v228 = vadd.f32 0.0, %v227
      %v229 = vpop.f32.mrf.mxu0
      %v230 = vpop.f32.mrf.mxu0
      %v231 = vpop.f32.mrf.mxu0
      %232 = vdwg.mxu0
      %233 = vrot.lane.b32.xlu0 %v116, 120
      %v234 = vpop.permute.xlu0 %233
      %235 = vrot.lane.b32.xlu0 %v116, 88
      %v236 = vpop.permute.xlu0 %235
      %v238 = vsel %vm119, %v234, 0
      %v241 = vsel %vm119, %v236, 0
      %243 = vmatprep.subr.bf16.mxu0 0
      %244 = vmatpush1.bf16.xpose.msra.mxu0 0
      %245 = vmatprep.subr.bf16.mxu0 0
      %246 = vmatpush1.bf16.xpose.msra.mxu0 0
      %247 = vmatprep.subr.bf16.mxu0 0
      %248 = vmatpush1.bf16.xpose.msra.mxu0 0
      %249 = vmatprep.subr.bf16.mxu0 0
      %250 = vmatpush1.bf16.xpose.msra.mxu0 0
      %251 = vmatprep.subr.bf16.mxu0 0
      %252 = vmatpush1.bf16.xpose.msra.mxu0 0
      %253 = vmatprep.subr.bf16.mxu0 0
      %254 = vmatpush1.bf16.xpose.msra.mxu0 0
      %255 = vmatprep.subr.bf16.mxu0 0
      %256 = vmatpush1.bf16.xpose.msra.mxu0 0
      %257 = vmatprep.subr.bf16.mxu0 0
      %258 = vmatpush1.bf16.xpose.msra.mxu0 %v241
      %259 = vmatprep.subr.bf16.mxu0 0
      %260 = vmatpush2.bf16.xpose.msra.mxu0 0
      %261 = vmatprep.subr.bf16.mxu0 0
      %262 = vmatpush2.bf16.xpose.msra.mxu0 0
      %263 = vmatprep.subr.bf16.mxu0 0
      %264 = vmatpush2.bf16.xpose.msra.mxu0 0
      %265 = vmatprep.subr.bf16.mxu0 0
      %266 = vmatpush2.bf16.xpose.msra.mxu0 0
      %267 = vmatprep.subr.bf16.mxu0 0
      %268 = vmatpush2.bf16.xpose.msra.mxu0 0
      %269 = vmatprep.subr.bf16.mxu0 0
      %270 = vmatpush2.bf16.xpose.msra.mxu0 0
      %271 = vmatprep.subr.bf16.mxu0 0
      %272 = vmatpush2.bf16.xpose.msra.mxu0 0
      %273 = vmatprep.subr.bf16.mxu0 0
      %274 = vmatpush2.bf16.xpose.msra.mxu0 0
      %275 = vmatprep.mubr.bf16.mxu0 0
      %276 = vmatmul.mubr.bf16.gmra.mxu0 %v238
      %v277 = vpop.f32.mrf.mxu0
      %v278 = vadd.f32 0.0, %v277
      %v279 = vpop.f32.mrf.mxu0
      %v280 = vpop.f32.mrf.mxu0
      %v281 = vpop.f32.mrf.mxu0
      %282 = vdwg.mxu0
      %v283 = vmul.f32 %v278, 0.35355338
      %v284 = vsel %vm167, %v283, -inf
      %285 = vmax.xlane.f32.xlu0 %v284
      %v286 = vpop.xlane.xlu0 %285
      %v287 = vsub.f32 %v283, %v286
      %v288 = vmul.f32 %v287, 1.442695
      %v289 = vpow.pop %v288
      %v290 = vsel %vm167, %v289, 0.0
      %291 = vadd.xlane.f32.xlu0 %v290
      %v292 = vpop.xlane.xlu0 %291
      %v293 = vrcp.pop %v292
      %v294 = vmul.f32 %v289, %v293
      %v295 = vpack.c.bf16 %v294, %v294
      %296 = vrot.lane.b32.xlu0 %v116, 56
      %v297 = vpop.permute.xlu0 %296
      %v299 = vsel %vm182, %v295, 0
      %v302 = vand.u32 %v297, %v189
      %304 = vmatprep.subr.bf16.mxu0 0
      %305 = vmatpush1.bf16.msra.mxu0 0
      %306 = vmatprep.subr.bf16.mxu0 0
      %307 = vmatpush1.bf16.msra.mxu0 0
      %308 = vmatprep.subr.bf16.mxu0 0
      %309 = vmatpush1.bf16.msra.mxu0 0
      %310 = vmatprep.subr.bf16.mxu0 0
      %311 = vmatpush1.bf16.msra.mxu0 0
      %312 = vmatprep.subr.bf16.mxu0 0
      %313 = vmatpush1.bf16.msra.mxu0 0
      %314 = vmatprep.subr.bf16.mxu0 0
      %315 = vmatpush1.bf16.msra.mxu0 0
      %316 = vmatprep.subr.bf16.mxu0 0
      %317 = vmatpush1.bf16.msra.mxu0 0
      %318 = vmatprep.subr.bf16.mxu0 0
      %319 = vmatpush1.bf16.msra.mxu0 %v302
      %320 = vmatprep.subr.bf16.mxu0 0
      %321 = vmatpush2.bf16.msra.mxu0 0
      %322 = vmatprep.subr.bf16.mxu0 0
      %323 = vmatpush2.bf16.msra.mxu0 0
      %324 = vmatprep.subr.bf16.mxu0 0
      %325 = vmatpush2.bf16.msra.mxu0 0
      %326 = vmatprep.subr.bf16.mxu0 0
      %327 = vmatpush2.bf16.msra.mxu0 0
      %328 = vmatprep.subr.bf16.mxu0 0
      %329 = vmatpush2.bf16.msra.mxu0 0
      %330 = vmatprep.subr.bf16.mxu0 0
      %331 = vmatpush2.bf16.msra.mxu0 0
      %332 = vmatprep.subr.bf16.mxu0 0
      %333 = vmatpush2.bf16.msra.mxu0 0
      %334 = vmatprep.subr.bf16.mxu0 0
      %335 = vmatpush2.bf16.msra.mxu0 0
      %336 = vmatprep.mubr.bf16.mxu0 0
      %337 = vmatmul.mubr.bf16.gmra.mxu0 %v299
      %v338 = vpop.f32.mrf.mxu0
      %v339 = vadd.f32 0.0, %v338
      %v340 = vpop.f32.mrf.mxu0
      %v341 = vpop.f32.mrf.mxu0
      %v342 = vpop.f32.mrf.mxu0
      %343 = vdwg.mxu0
      %344 = vrot.lane.b32.xlu0 %v116, 112
      %v345 = vpop.permute.xlu0 %344
      %346 = vrot.lane.b32.xlu0 %v116, 80
      %v347 = vpop.permute.xlu0 %346
      %v349 = vsel %vm119, %v345, 0
      %v352 = vsel %vm119, %v347, 0
      %354 = vmatprep.subr.bf16.mxu0 0
      %355 = vmatpush1.bf16.xpose.msra.mxu0 0
      %356 = vmatprep.subr.bf16.mxu0 0
      %357 = vmatpush1.bf16.xpose.msra.mxu0 0
      %358 = vmatprep.subr.bf16.mxu0 0
      %359 = vmatpush1.bf16.xpose.msra.mxu0 0
      %360 = vmatprep.subr.bf16.mxu0 0
      %361 = vmatpush1.bf16.xpose.msra.mxu0 0
      %362 = vmatprep.subr.bf16.mxu0 0
      %363 = vmatpush1.bf16.xpose.msra.mxu0 0
      %364 = vmatprep.subr.bf16.mxu0 0
      %365 = vmatpush1.bf16.xpose.msra.mxu0 0
      %366 = vmatprep.subr.bf16.mxu0 0
      %367 = vmatpush1.bf16.xpose.msra.mxu0 0
      %368 = vmatprep.subr.bf16.mxu0 0
      %369 = vmatpush1.bf16.xpose.msra.mxu0 %v352
      %370 = vmatprep.subr.bf16.mxu0 0
      %371 = vmatpush2.bf16.xpose.msra.mxu0 0
      %372 = vmatprep.subr.bf16.mxu0 0
      %373 = vmatpush2.bf16.xpose.msra.mxu0 0
      %374 = vmatprep.subr.bf16.mxu0 0
      %375 = vmatpush2.bf16.xpose.msra.mxu0 0
      %376 = vmatprep.subr.bf16.mxu0 0
      %377 = vmatpush2.bf16.xpose.msra.mxu0 0
      %378 = vmatprep.subr.bf16.mxu0 0
      %379 = vmatpush2.bf16.xpose.msra.mxu0 0
      %380 = vmatprep.subr.bf16.mxu0 0
      %381 = vmatpush2.bf16.xpose.msra.mxu0 0
      %382 = vmatprep.subr.bf16.mxu0 0
      %383 = vmatpush2.bf16.xpose.msra.mxu0 0
      %384 = vmatprep.subr.bf16.mxu0 0
      %385 = vmatpush2.bf16.xpose.msra.mxu0 0
      %386 = vmatprep.mubr.bf16.mxu0 0
      %387 = vmatmul.mubr.bf16.gmra.mxu0 %v349
      %v388 = vpop.f32.mrf.mxu0
      %v389 = vadd.f32 0.0, %v388
      %v390 = vpop.f32.mrf.mxu0
      %v391 = vpop.f32.mrf.mxu0
      %v392 = vpop.f32.mrf.mxu0
      %393 = vdwg.mxu0
      %v394 = vmul.f32 %v389, 0.35355338
      %v395 = vsel %vm167, %v394, -inf
      %396 = vmax.xlane.f32.xlu0 %v395
      %v397 = vpop.xlane.xlu0 %396
      %v398 = vsub.f32 %v394, %v397
      %v399 = vmul.f32 %v398, 1.442695
      %v400 = vpow.pop %v399
      %v401 = vsel %vm167, %v400, 0.0
      %402 = vadd.xlane.f32.xlu0 %v401
      %v403 = vpop.xlane.xlu0 %402
      %v404 = vrcp.pop %v403
      %v405 = vmul.f32 %v400, %v404
      %v406 = vpack.c.bf16 %v405, %v405
      %407 = vrot.lane.b32.xlu0 %v116, 48
      %v408 = vpop.permute.xlu0 %407
      %v410 = vsel %vm182, %v406, 0
      %v413 = vand.u32 %v408, %v189
      %415 = vmatprep.subr.bf16.mxu0 0
      %416 = vmatpush1.bf16.msra.mxu0 0
      %417 = vmatprep.subr.bf16.mxu0 0
      %418 = vmatpush1.bf16.msra.mxu0 0
      %419 = vmatprep.subr.bf16.mxu0 0
      %420 = vmatpush1.bf16.msra.mxu0 0
      %421 = vmatprep.subr.bf16.mxu0 0
      %422 = vmatpush1.bf16.msra.mxu0 0
      %423 = vmatprep.subr.bf16.mxu0 0
      %424 = vmatpush1.bf16.msra.mxu0 0
      %425 = vmatprep.subr.bf16.mxu0 0
      %426 = vmatpush1.bf16.msra.mxu0 0
      %427 = vmatprep.subr.bf16.mxu0 0
      %428 = vmatpush1.bf16.msra.mxu0 0
      %429 = vmatprep.subr.bf16.mxu0 0
      %430 = vmatpush1.bf16.msra.mxu0 %v413
      %431 = vmatprep.subr.bf16.mxu0 0
      %432 = vmatpush2.bf16.msra.mxu0 0
      %433 = vmatprep.subr.bf16.mxu0 0
      %434 = vmatpush2.bf16.msra.mxu0 0
      %435 = vmatprep.subr.bf16.mxu0 0
      %436 = vmatpush2.bf16.msra.mxu0 0
      %437 = vmatprep.subr.bf16.mxu0 0
      %438 = vmatpush2.bf16.msra.mxu0 0
      %439 = vmatprep.subr.bf16.mxu0 0
      %440 = vmatpush2.bf16.msra.mxu0 0
      %441 = vmatprep.subr.bf16.mxu0 0
      %442 = vmatpush2.bf16.msra.mxu0 0
      %443 = vmatprep.subr.bf16.mxu0 0
      %444 = vmatpush2.bf16.msra.mxu0 0
      %445 = vmatprep.subr.bf16.mxu0 0
      %446 = vmatpush2.bf16.msra.mxu0 0
      %447 = vmatprep.mubr.bf16.mxu0 0
      %448 = vmatmul.mubr.bf16.gmra.mxu0 %v410
      %v449 = vpop.f32.mrf.mxu0
      %v450 = vadd.f32 0.0, %v449
      %v451 = vpop.f32.mrf.mxu0
      %v452 = vpop.f32.mrf.mxu0
      %v453 = vpop.f32.mrf.mxu0
      %454 = vdwg.mxu0
      %455 = vrot.lane.b32.xlu0 %v116, 104
      %v456 = vpop.permute.xlu0 %455
      %457 = vrot.lane.b32.xlu0 %v116, 72
      %v458 = vpop.permute.xlu0 %457
      %v460 = vsel %vm119, %v456, 0
      %v463 = vsel %vm119, %v458, 0
      %465 = vmatprep.subr.bf16.mxu0 0
      %466 = vmatpush1.bf16.xpose.msra.mxu0 0
      %467 = vmatprep.subr.bf16.mxu0 0
      %468 = vmatpush1.bf16.xpose.msra.mxu0 0
      %469 = vmatprep.subr.bf16.mxu0 0
      %470 = vmatpush1.bf16.xpose.msra.mxu0 0
      %471 = vmatprep.subr.bf16.mxu0 0
      %472 = vmatpush1.bf16.xpose.msra.mxu0 0
      %473 = vmatprep.subr.bf16.mxu0 0
      %474 = vmatpush1.bf16.xpose.msra.mxu0 0
      %475 = vmatprep.subr.bf16.mxu0 0
      %476 = vmatpush1.bf16.xpose.msra.mxu0 0
      %477 = vmatprep.subr.bf16.mxu0 0
      %478 = vmatpush1.bf16.xpose.msra.mxu0 0
      %479 = vmatprep.subr.bf16.mxu0 0
      %480 = vmatpush1.bf16.xpose.msra.mxu0 %v463
      %481 = vmatprep.subr.bf16.mxu0 0
      %482 = vmatpush2.bf16.xpose.msra.mxu0 0
      %483 = vmatprep.subr.bf16.mxu0 0
      %484 = vmatpush2.bf16.xpose.msra.mxu0 0
      %485 = vmatprep.subr.bf16.mxu0 0
      %486 = vmatpush2.bf16.xpose.msra.mxu0 0
      %487 = vmatprep.subr.bf16.mxu0 0
      %488 = vmatpush2.bf16.xpose.msra.mxu0 0
      %489 = vmatprep.subr.bf16.mxu0 0
      %490 = vmatpush2.bf16.xpose.msra.mxu0 0
      %491 = vmatprep.subr.bf16.mxu0 0
      %492 = vmatpush2.bf16.xpose.msra.mxu0 0
      %493 = vmatprep.subr.bf16.mxu0 0
      %494 = vmatpush2.bf16.xpose.msra.mxu0 0
      %495 = vmatprep.subr.bf16.mxu0 0
      %496 = vmatpush2.bf16.xpose.msra.mxu0 0
      %497 = vmatprep.mubr.bf16.mxu0 0
      %498 = vmatmul.mubr.bf16.gmra.mxu0 %v460
      %v499 = vpop.f32.mrf.mxu0
      %v500 = vadd.f32 0.0, %v499
      %v501 = vpop.f32.mrf.mxu0
      %v502 = vpop.f32.mrf.mxu0
      %v503 = vpop.f32.mrf.mxu0
      %504 = vdwg.mxu0
      %v505 = vmul.f32 %v500, 0.35355338
      %v506 = vsel %vm167, %v505, -inf
      %507 = vmax.xlane.f32.xlu0 %v506
      %v508 = vpop.xlane.xlu0 %507
      %v509 = vsub.f32 %v505, %v508
      %v510 = vmul.f32 %v509, 1.442695
      %v511 = vpow.pop %v510
      %v512 = vsel %vm167, %v511, 0.0
      %513 = vadd.xlane.f32.xlu0 %v512
      %v514 = vpop.xlane.xlu0 %513
      %v515 = vrcp.pop %v514
      %v516 = vmul.f32 %v511, %v515
      %v517 = vpack.c.bf16 %v516, %v516
      %518 = vrot.lane.b32.xlu0 %v116, 40
      %v519 = vpop.permute.xlu0 %518
      %v521 = vsel %vm182, %v517, 0
      %v524 = vand.u32 %v519, %v189
      %526 = vmatprep.subr.bf16.mxu0 0
      %527 = vmatpush1.bf16.msra.mxu0 0
      %528 = vmatprep.subr.bf16.mxu0 0
      %529 = vmatpush1.bf16.msra.mxu0 0
      %530 = vmatprep.subr.bf16.mxu0 0
      %531 = vmatpush1.bf16.msra.mxu0 0
      %532 = vmatprep.subr.bf16.mxu0 0
      %533 = vmatpush1.bf16.msra.mxu0 0
      %534 = vmatprep.subr.bf16.mxu0 0
      %535 = vmatpush1.bf16.msra.mxu0 0
      %536 = vmatprep.subr.bf16.mxu0 0
      %537 = vmatpush1.bf16.msra.mxu0 0
      %538 = vmatprep.subr.bf16.mxu0 0
      %539 = vmatpush1.bf16.msra.mxu0 0
      %540 = vmatprep.subr.bf16.mxu0 0
      %541 = vmatpush1.bf16.msra.mxu0 %v524
      %542 = vmatprep.subr.bf16.mxu0 0
      %543 = vmatpush2.bf16.msra.mxu0 0
      %544 = vmatprep.subr.bf16.mxu0 0
      %545 = vmatpush2.bf16.msra.mxu0 0
      %546 = vmatprep.subr.bf16.mxu0 0
      %547 = vmatpush2.bf16.msra.mxu0 0
      %548 = vmatprep.subr.bf16.mxu0 0
      %549 = vmatpush2.bf16.msra.mxu0 0
      %550 = vmatprep.subr.bf16.mxu0 0
      %551 = vmatpush2.bf16.msra.mxu0 0
      %552 = vmatprep.subr.bf16.mxu0 0
      %553 = vmatpush2.bf16.msra.mxu0 0
      %554 = vmatprep.subr.bf16.mxu0 0
      %555 = vmatpush2.bf16.msra.mxu0 0
      %556 = vmatprep.subr.bf16.mxu0 0
      %557 = vmatpush2.bf16.msra.mxu0 0
      %558 = vmatprep.mubr.bf16.mxu0 0
      %559 = vmatmul.mubr.bf16.gmra.mxu0 %v521
      %v560 = vpop.f32.mrf.mxu0
      %v561 = vadd.f32 0.0, %v560
      %v562 = vpop.f32.mrf.mxu0
      %v563 = vpop.f32.mrf.mxu0
      %v564 = vpop.f32.mrf.mxu0
      %565 = vdwg.mxu0
      %567 = vrot.lane.b32.xlu0 %v339, 8
      %v568 = vpop.permute.xlu0 %567
      %571 = vrot.lane.b32.xlu0 %v450, 16
      %v572 = vpop.permute.xlu0 %571
      %575 = vrot.lane.b32.xlu0 %v561, 24
      %v576 = vpop.permute.xlu0 %575
      %v578 = vsel %vm119, %v228, %v568
      %vm579 = vcmask 130048
      %v580 = vsel %vm579, %v578, %v572
      %vm581 = vcmask 195584
      %v582 = vsel %vm581, %v580, %v576
      %v583 = vpack.c.bf16 %v582, %v582
      %vm584 = vcmask 256000
      %vm585 = vsmask.f32 2304
      %vm586 = vmand %vm584, %vm585
      %v587 = vld [vmem:[%s111] sm:$0x7]
      %v588 = vsel %vm586, %v583, %v587
      %589 = vst [vmem:[%s111] sm:$0x7] %v588
      %p590 = scmp.lt.s32.totalorder %s12, 1
      %s591 = scalar_select %p590, %s12, 1
      %s592 = smul.addr %s591, 4
      %s593 = scalar_lea.vmem %s1, %s592
      // Predicated region
      $region25: #{_lambda_.14} parent=23 // pred_check
        %p594 = pneg %p56
      $region26: #{_lambda_.14} parent=23 // pred_check_branch
        %596 = sbr.rel (%p594) target = $region28
      $region27: #{_lambda_.14} parent=23 // pred_region
        _
      $region28: #{_lambda_.14} parent=23 // pred_fallthru
        _
    $region24: #{_lambda_.14} parent=5 // pred_fallthru
      _
    %p597 = scmp.le.s32.totalorder 2, %s7
    // Predicated region
    $region29: #{_lambda_.14} parent=5 // pred_check
      %p598 = pneg %p597
    $region30: #{_lambda_.14} parent=5 // pred_check_branch
      %600 = sbr.rel (%p598) target = $region32
    $region31: #{_lambda_.14} parent=5 // pred_region
      %s601 = ssub.s32 %s7, 2
      // Predicated region
      $region33: #{_lambda_.14} parent=31 // pred_check
        %p602 = pneg %p62
      $region34: #{_lambda_.14} parent=31 // pred_check_branch
        %604 = sbr.rel (%p602) target = $region36
      $region35: #{_lambda_.14} parent=31 // pred_region
        %p605 = scmp.lt.s32.totalorder %s13, 1
        %s606 = scalar_select %p605, %s13, 1
        %s607 = smul.addr %s606, 4
        %s608 = scalar_lea.vmem %s1, %s607
      $region36: #{_lambda_.14} parent=31 // pred_fallthru
        _
    $region32: #{_lambda_.14} parent=5 // pred_fallthru
      _
  $region6: #{_lambda_.14} parent=0 // loop_footer
    %s11 = sadd.s32 1, %s7
  $region7: #{_lambda_.14} parent=0 // loop_footer_branch
    %6 = sbr.rel target = $region3
  $region8: #{_lambda_.14} parent=0 // loop_exit
    _

// kernel: _lambda_.16
$region0: #{_lambda_.16}
  #allocation0 [shape = 'u32[]', space=smem, size = 0x4, offset = 0x4, fixed_abs, tag = 'smem constant byte address 0x4 - core index']
  #allocation1 [shape = 'u32[144,128]{1,0:T(1,128)}', space=vmem, size = 0x12000, scoped, tag = 'internal scratch']
  #allocation2 [shape = 'f32[16,128]{1,0:T(8,128)}', space=vmem, size = 0x2000, scoped, tag = 'scratch operand']
  %s0 = inlined_call_operand.vmem [shape: bf16[16,128], index: 0, kind: input, shape index: {}]
  %s1 = inlined_call_operand.vmem [shape: bf16[128,128], index: 1, kind: input, shape index: {}]
  %s2 = inlined_call_operand.vmem [shape: f32[1,128], index: 2, kind: input, shape index: {}]
  %s3 = inlined_call_operand.vmem [shape: f32[1,128], index: 3, kind: input, shape index: {}]
  %s4 = inlined_call_operand.vmem [shape: f32[1,128], index: 4, kind: input, shape index: {}]
  %s5 = inlined_call_operand.vmem [shape: bf16[16,128], index: 5, kind: output, shape index: {}]
  %s6 = sld [smem:[#allocation0]]
  $region38: #{_lambda_.16} parent=0
    _
  %s8 = ssub.s32 1, %s6
  %s9 = scalar_select 0, %s8, %s6
  // Predicated region
  $region2: #{_lambda_.16} parent=0 // pred_check
    _
  $region3: #{_lambda_.16} parent=0 // pred_check_branch
    %11 = sbr.rel (0) target = $region5
  $region4: #{_lambda_.16} parent=0 // pred_region
    _
  $region5: #{_lambda_.16} parent=0 // pred_fallthru
    _
  // Predicated region
  $region6: #{_lambda_.16} parent=0 // pred_check
    _
  $region7: #{_lambda_.16} parent=0 // pred_check_branch
    %13 = sbr.rel (0) target = $region9
  $region8: #{_lambda_.16} parent=0 // pred_region
    _
  $region9: #{_lambda_.16} parent=0 // pred_fallthru
    _
  // Predicated region
  $region10: #{_lambda_.16} parent=0 // pred_check
    _
  $region11: #{_lambda_.16} parent=0 // pred_check_branch
    %15 = sbr.rel (0) target = $region13
  $region12: #{_lambda_.16} parent=0 // pred_region
    _
  $region13: #{_lambda_.16} parent=0 // pred_fallthru
    _
  // Predicated region
  $region14: #{_lambda_.16} parent=0 // pred_check
    _
  $region15: #{_lambda_.16} parent=0 // pred_check_branch
    %17 = sbr.rel (0) target = $region17
  $region16: #{_lambda_.16} parent=0 // pred_region
    _
  $region17: #{_lambda_.16} parent=0 // pred_fallthru
    _
  // Predicated region
  $region18: #{_lambda_.16} parent=0 // pred_check
    _
  $region19: #{_lambda_.16} parent=0 // pred_check_branch
    %19 = sbr.rel (0) target = $region21
  $region20: #{_lambda_.16} parent=0 // pred_region
    _
  $region21: #{_lambda_.16} parent=0 // pred_fallthru
    _
  %p21 = scmp.eq.s32.totalorder 0, 0
  // Predicated region
  $region22: #{_lambda_.16} parent=0 // pred_check
    %p22 = pneg %p21
  $region23: #{_lambda_.16} parent=0 // pred_check_branch
    %24 = sbr.rel (%p22) target = $region25
  $region24: #{_lambda_.16} parent=0 // pred_region
    %25 = vst [vmem:[#allocation2] sm:$0xff] 0.0
    %26 = vst [vmem:[#allocation2 + $0x8] sm:$0xff] 0.0
  $region25: #{_lambda_.16} parent=0 // pred_fallthru
    _
  %v27 = vld [vmem:[%s0] sm:$0xf]
  %v28 = vld [vmem:[%s0 + $0x4] sm:$0xf]
  %v29 = vunpack.c.l.bf16 %v27
  %v30 = vunpack.c.l.bf16 %v28
  %31 = vadd.xlane.f32.xlu0 %v29
  %v32 = vpop.xlane.xlu0 %31
  %33 = vadd.xlane.f32.xlu0 %v30
  %v34 = vpop.xlane.xlu0 %33
  %v35 = vmul.f32 %v32, 0.03125
  %v36 = vmul.f32 %v34, 0.03125
  %v37 = vmul.f32 %v29, %v29
  %v38 = vmul.f32 %v30, %v30
  %39 = vadd.xlane.f32.xlu0 %v37
  %v40 = vpop.xlane.xlu0 %39
  %41 = vadd.xlane.f32.xlu0 %v38
  %v42 = vpop.xlane.xlu0 %41
  %v43 = vmul.f32 %v40, 0.03125
  %v44 = vmul.f32 %v42, 0.03125
  %v45 = vmul.f32 %v35, %v35
  %v46 = vmul.f32 %v36, %v36
  %v47 = vsub.f32 %v43, %v45
  %v48 = vsub.f32 %v44, %v46
  %v49 = vmax.f32 %v47, 0.0
  %v50 = vmax.f32 %v48, 0.0
  %v51 = vsub.f32 %v29, %v35
  %v52 = vsub.f32 %v30, %v36
  %v53 = vadd.f32 %v49, 1e-06
  %v54 = vadd.f32 %v50, 1e-06
  %v55 = vrsqrt.pop %v53
  %v56 = vrsqrt.pop %v54
  %v57 = vmul.f32 %v51, %v55
  %v58 = vmul.f32 %v52, %v56
  %v59 = vld [vmem:[%s3] sm:$0x1]
  %v61 = vlaneseq
  %v62 = vshrl.u32 %v61, 7
  %v63 = vsub.s32 0, %v62
  %v64 = vrot.slane %v59, %v63
  %v66 = vmul.f32 %v57, %v64
  %v67 = vmul.f32 %v58, %v64
  %v68 = vld [vmem:[%s4] sm:$0x1]
  %v70 = vlaneseq
  %v71 = vshrl.u32 %v70, 7
  %v72 = vsub.s32 0, %v71
  %v73 = vrot.slane %v68, %v72
  %v75 = vadd.f32 %v66, %v73
  %v76 = vadd.f32 %v67, %v73
  %v77 = vpack.c.bf16 %v76, %v75
  %v78 = vld [vmem:[#allocation2] sm:$0xff]
  %v79 = vld [vmem:[#allocation2 + $0x8] sm:$0xff]
  %v80 = vld [vmem:[%s1] sm:$0xf]
  %v81 = vld [vmem:[%s1 + $0x4] sm:$0xf]
  %v82 = vld [vmem:[%s1 + $0x8] sm:$0xf]
  %v83 = vld [vmem:[%s1 + $0xc] sm:$0xf]
  %v84 = vld [vmem:[%s1 + $0x10] sm:$0xf]
  %v85 = vld [vmem:[%s1 + $0x14] sm:$0xf]
  %v86 = vld [vmem:[%s1 + $0x18] sm:$0xf]
  %v87 = vld [vmem:[%s1 + $0x1c] sm:$0xf]
  %v88 = vld [vmem:[%s1 + $0x20] sm:$0xf]
  %v89 = vld [vmem:[%s1 + $0x24] sm:$0xf]
  %v90 = vld [vmem:[%s1 + $0x28] sm:$0xf]
  %v91 = vld [vmem:[%s1 + $0x2c] sm:$0xf]
  %v92 = vld [vmem:[%s1 + $0x30] sm:$0xf]
  %v93 = vld [vmem:[%s1 + $0x34] sm:$0xf]
  %v94 = vld [vmem:[%s1 + $0x38] sm:$0xf]
  %v95 = vld [vmem:[%s1 + $0x3c] sm:$0xf]
  %v112 = vunpack.c.l.b16 %v80
  %v113 = vunpack.c.l.b16 %v81
  %v114 = vunpack.c.l.b16 %v82
  %v115 = vunpack.c.l.b16 %v83
  %v116 = vunpack.c.l.b16 %v84
  %v117 = vunpack.c.l.b16 %v85
  %v118 = vunpack.c.l.b16 %v86
  %v119 = vunpack.c.l.b16 %v87
  %v120 = vunpack.c.l.b16 %v88
  %v121 = vunpack.c.l.b16 %v89
  %v122 = vunpack.c.l.b16 %v90
  %v123 = vunpack.c.l.b16 %v91
  %v124 = vunpack.c.l.b16 %v92
  %v125 = vunpack.c.l.b16 %v93
  %v126 = vunpack.c.l.b16 %v94
  %v127 = vunpack.c.l.b16 %v95
  %v128 = vpack.c.b16 %v113, %v112
  %v129 = vpack.c.b16 %v115, %v114
  %v130 = vpack.c.b16 %v117, %v116
  %v131 = vpack.c.b16 %v119, %v118
  %v132 = vpack.c.b16 %v121, %v120
  %v133 = vpack.c.b16 %v123, %v122
  %v134 = vpack.c.b16 %v125, %v124
  %v135 = vpack.c.b16 %v127, %v126
  %144 = vmatprep.subr.bf16.mxu0 0
  %145 = vmatpush1.bf16.msra.mxu0 %v135
  %146 = vmatprep.subr.bf16.mxu0 0
  %147 = vmatpush1.bf16.msra.mxu0 %v134
  %148 = vmatprep.subr.bf16.mxu0 0
  %149 = vmatpush1.bf16.msra.mxu0 %v133
  %150 = vmatprep.subr.bf16.mxu0 0
  %151 = vmatpush1.bf16.msra.mxu0 %v132
  %152 = vmatprep.subr.bf16.mxu0 0
  %153 = vmatpush1.bf16.msra.mxu0 %v131
  %154 = vmatprep.subr.bf16.mxu0 0
  %155 = vmatpush1.bf16.msra.mxu0 %v130
  %156 = vmatprep.subr.bf16.mxu0 0
  %157 = vmatpush1.bf16.msra.mxu0 %v129
  %158 = vmatprep.subr.bf16.mxu0 0
  %159 = vmatpush1.bf16.msra.mxu0 %v128
  %160 = vmatprep.subr.bf16.mxu0 0
  %161 = vmatpush2.bf16.msra.mxu0 0
  %162 = vmatprep.subr.bf16.mxu0 0
  %163 = vmatpush2.bf16.msra.mxu0 0
  %164 = vmatprep.subr.bf16.mxu0 0
  %165 = vmatpush2.bf16.msra.mxu0 0
  %166 = vmatprep.subr.bf16.mxu0 0
  %167 = vmatpush2.bf16.msra.mxu0 0
  %168 = vmatprep.subr.bf16.mxu0 0
  %169 = vmatpush2.bf16.msra.mxu0 0
  %170 = vmatprep.subr.bf16.mxu0 0
  %171 = vmatpush2.bf16.msra.mxu0 0
  %172 = vmatprep.subr.bf16.mxu0 0
  %173 = vmatpush2.bf16.msra.mxu0 0
  %174 = vmatprep.subr.bf16.mxu0 0
  %175 = vmatpush2.bf16.msra.mxu0 0
  %176 = vmatprep.mubr.bf16.mxu0 0
  %177 = vmatmul.mubr.bf16.gmra.mxu0 %v77
  %v178 = vpop.f32.mrf.mxu0
  %v179 = vadd.f32 0.0, %v178
  %v180 = vpop.f32.mrf.mxu0
  %v181 = vpop.f32.mrf.mxu0
  %v182 = vadd.f32 0.0, %v181
  %v183 = vpop.f32.mrf.mxu0
  %184 = vdwg.mxu0
  %v185 = vadd.f32 %v78, %v179
  %v186 = vadd.f32 %v79, %v182
  %187 = vst [vmem:[#allocation2] sm:$0xff] %v185
  %188 = vst [vmem:[#allocation2 + $0x8] sm:$0xff] %v186
  // Predicated region
  $region26: #{_lambda_.16} parent=0 // pred_check
    %p189 = pneg %p21
  $region27: #{_lambda_.16} parent=0 // pred_check_branch
    %191 = sbr.rel (%p189) target = $region29
  $region28: #{_lambda_.16} parent=0 // pred_region
    %v192 = vld [vmem:[#allocation2] sm:$0xff]
    %v193 = vld [vmem:[#allocation2 + $0x8] sm:$0xff]
    %v194 = vld [vmem:[%s2] sm:$0x1]
    %v196 = vlaneseq
    %v197 = vshrl.u32 %v196, 7
    %v198 = vsub.s32 0, %v197
    %v199 = vrot.slane %v194, %v198
    %v201 = vadd.f32 %v192, %v199
    %v202 = vadd.f32 %v193, %v199
    %v203 = vmul.f32 %v201, 0.5
    %v204 = vmul.f32 %v202, 0.5
    %v205 = vmul.f32 %v201, 0.70710677
    %v206 = vmul.f32 %v202, 0.70710677
    %v207 = vand.u32 2147483647, %v205
    %v208 = vand.u32 2147483647, %v206
    %v209 = vmul.f32 %v207, 0.3275911
    %v210 = vmul.f32 %v208, 0.3275911
    %v211 = vadd.f32 %v209, 1.0
    %v212 = vadd.f32 %v210, 1.0
    %v213 = vrcp.pop %v211
    %v214 = vrcp.pop %v212
    %v215 = vmul.f32 %v213, 1.0614054
    %v216 = vmul.f32 %v214, 1.0614054
    %v217 = vadd.f32 %v215, -1.4531521
    %v218 = vadd.f32 %v216, -1.4531521
    %v219 = vmul.f32 %v217, %v213
    %v220 = vmul.f32 %v218, %v214
    %v221 = vadd.f32 %v219, 1.4214138
    %v222 = vadd.f32 %v220, 1.4214138
    %v223 = vmul.f32 %v221, %v213
    %v224 = vmul.f32 %v222, %v214
    %v225 = vadd.f32 %v223, -0.28449672
    %v226 = vadd.f32 %v224, -0.28449672
    %v227 = vmul.f32 %v225, %v213
    %v228 = vmul.f32 %v226, %v214
    %v229 = vadd.f32 %v227, 0.2548296
    %v230 = vadd.f32 %v228, 0.2548296
    %v231 = vmul.f32 %v229, %v213
    %v232 = vmul.f32 %v230, %v214
    %v233 = vsub.f32 0.0, %v207
    %v234 = vsub.f32 0.0, %v208
    %v235 = vmul.f32 %v233, %v207
    %v236 = vmul.f32 %v234, %v208
    %v237 = vmul.f32 %v235, 1.442695
    %v238 = vpow.pop %v237
    %v239 = vmul.f32 %v236, 1.442695
    %v240 = vpow.pop %v239
    %v241 = vmul.f32 %v231, %v238
    %v242 = vmul.f32 %v232, %v240
    %v243 = vsub.f32 1.0, %v241
    %v244 = vsub.f32 1.0, %v242
    %vm245 = vcmp.lt.f32.partialorder %v205, 0.0
    %vm246 = vcmp.lt.f32.partialorder %v206, 0.0
    %v247 = vsub.f32 0.0, %v243
    %v248 = vsub.f32 0.0, %v244
    %v249 = vsel %vm245, %v247, %v243
    %v250 = vsel %vm246, %v248, %v244
    %v251 = vadd.f32 %v249, 1.0
    %v252 = vadd.f32 %v250, 1.0
    %v253 = vmul.f32 %v203, %v251
    %v254 = vmul.f32 %v204, %v252
    %v255 = vpack.c.bf16 %v254, %v253
    %v257 = vunpack.c.l.b16 %v255
    %v258 = vunpack.c.h.b16 %v255
    %v259 = vpack.c.b16 %v257, %v257
    %v260 = vpack.c.b16 %v258, %v258
    %263 = vst [vmem:[%s5] sm:$0xf] %v259
    %264 = vst [vmem:[%s5 + $0x4] sm:$0xf] %v260
  $region29: #{_lambda_.16} parent=0 // pred_fallthru
    _
  // Predicated region
  $region30: #{_lambda_.16} parent=0 // pred_check
    _
  $region31: #{_lambda_.16} parent=0 // pred_check_branch
    %266 = sbr.rel (0) target = $region33
  $region32: #{_lambda_.16} parent=0 // pred_region
    _
  $region33: #{_lambda_.16} parent=0 // pred_fallthru
    _
  // Predicated region
  $region34: #{_lambda_.16} parent=0 // pred_check
    _
  $region35: #{_lambda_.16} parent=0 // pred_check_branch
    %268 = sbr.rel (0) target = $region37
  $region36: #{_lambda_.16} parent=0 // pred_region
    _
  $region37: #{_lambda_.16} parent=0 // pred_fallthru
    _

// kernel: _lambda_.23
$region0: #{_lambda_.23}
  #allocation0 [shape = 'u32[]', space=smem, size = 0x4, offset = 0x4, fixed_abs, tag = 'smem constant byte address 0x4 - core index']
  #allocation1 [shape = 'u32[144,128]{1,0:T(1,128)}', space=vmem, size = 0x12000, scoped, tag = 'internal scratch']
  #allocation2 [shape = 'f32[16,128]{1,0:T(8,128)}', space=vmem, size = 0x2000, scoped, tag = 'scratch operand']
  %s0 = inlined_call_operand.vmem [shape: bf16[16,128], index: 0, kind: input, shape index: {}]
  %s1 = inlined_call_operand.vmem [shape: bf16[128,128], index: 1, kind: input, shape index: {}]
  %s2 = inlined_call_operand.vmem [shape: f32[1,128], index: 2, kind: input, shape index: {}]
  %s3 = inlined_call_operand.vmem [shape: f32[1,128], index: 3, kind: input, shape index: {}]
  %s4 = inlined_call_operand.vmem [shape: f32[1,128], index: 4, kind: input, shape index: {}]
  %s5 = inlined_call_operand.vmem [shape: f32[16,128], index: 5, kind: output, shape index: {}]
  %s6 = sld [smem:[#allocation0]]
  $region38: #{_lambda_.23} parent=0
    _
  %s8 = ssub.s32 1, %s6
  %s9 = scalar_select 0, %s8, %s6
  // Predicated region
  $region2: #{_lambda_.23} parent=0 // pred_check
    _
  $region3: #{_lambda_.23} parent=0 // pred_check_branch
    %11 = sbr.rel (0) target = $region5
  $region4: #{_lambda_.23} parent=0 // pred_region
    _
  $region5: #{_lambda_.23} parent=0 // pred_fallthru
    _
  // Predicated region
  $region6: #{_lambda_.23} parent=0 // pred_check
    _
  $region7: #{_lambda_.23} parent=0 // pred_check_branch
    %13 = sbr.rel (0) target = $region9
  $region8: #{_lambda_.23} parent=0 // pred_region
    _
  $region9: #{_lambda_.23} parent=0 // pred_fallthru
    _
  // Predicated region
  $region10: #{_lambda_.23} parent=0 // pred_check
    _
  $region11: #{_lambda_.23} parent=0 // pred_check_branch
    %15 = sbr.rel (0) target = $region13
  $region12: #{_lambda_.23} parent=0 // pred_region
    _
  $region13: #{_lambda_.23} parent=0 // pred_fallthru
    _
  // Predicated region
  $region14: #{_lambda_.23} parent=0 // pred_check
    _
  $region15: #{_lambda_.23} parent=0 // pred_check_branch
    %17 = sbr.rel (0) target = $region17
  $region16: #{_lambda_.23} parent=0 // pred_region
    _
  $region17: #{_lambda_.23} parent=0 // pred_fallthru
    _
  // Predicated region
  $region18: #{_lambda_.23} parent=0 // pred_check
    _
  $region19: #{_lambda_.23} parent=0 // pred_check_branch
    %19 = sbr.rel (0) target = $region21
  $region20: #{_lambda_.23} parent=0 // pred_region
    _
  $region21: #{_lambda_.23} parent=0 // pred_fallthru
    _
  %p21 = scmp.eq.s32.totalorder 0, 0
  // Predicated region
  $region22: #{_lambda_.23} parent=0 // pred_check
    %p22 = pneg %p21
  $region23: #{_lambda_.23} parent=0 // pred_check_branch
    %24 = sbr.rel (%p22) target = $region25
  $region24: #{_lambda_.23} parent=0 // pred_region
    %25 = vst [vmem:[#allocation2] sm:$0xff] 0.0
    %26 = vst [vmem:[#allocation2 + $0x8] sm:$0xff] 0.0
  $region25: #{_lambda_.23} parent=0 // pred_fallthru
    _
  %v27 = vld [vmem:[%s0] sm:$0xf]
  %v28 = vld [vmem:[%s0 + $0x4] sm:$0xf]
  %v29 = vunpack.c.l.bf16 %v27
  %v30 = vunpack.c.l.bf16 %v28
  %31 = vadd.xlane.f32.xlu0 %v29
  %v32 = vpop.xlane.xlu0 %31
  %33 = vadd.xlane.f32.xlu0 %v30
  %v34 = vpop.xlane.xlu0 %33
  %v35 = vmul.f32 %v32, 0.03125
  %v36 = vmul.f32 %v34, 0.03125
  %v37 = vmul.f32 %v29, %v29
  %v38 = vmul.f32 %v30, %v30
  %39 = vadd.xlane.f32.xlu0 %v37
  %v40 = vpop.xlane.xlu0 %39
  %41 = vadd.xlane.f32.xlu0 %v38
  %v42 = vpop.xlane.xlu0 %41
  %v43 = vmul.f32 %v40, 0.03125
  %v44 = vmul.f32 %v42, 0.03125
  %v45 = vmul.f32 %v35, %v35
  %v46 = vmul.f32 %v36, %v36
  %v47 = vsub.f32 %v43, %v45
  %v48 = vsub.f32 %v44, %v46
  %v49 = vmax.f32 %v47, 0.0
  %v50 = vmax.f32 %v48, 0.0
  %v51 = vsub.f32 %v29, %v35
  %v52 = vsub.f32 %v30, %v36
  %v53 = vadd.f32 %v49, 1e-06
  %v54 = vadd.f32 %v50, 1e-06
  %v55 = vrsqrt.pop %v53
  %v56 = vrsqrt.pop %v54
  %v57 = vmul.f32 %v51, %v55
  %v58 = vmul.f32 %v52, %v56
  %v59 = vld [vmem:[%s3] sm:$0x1]
  %v61 = vlaneseq
  %v62 = vshrl.u32 %v61, 7
  %v63 = vsub.s32 0, %v62
  %v64 = vrot.slane %v59, %v63
  %v66 = vmul.f32 %v57, %v64
  %v67 = vmul.f32 %v58, %v64
  %v68 = vld [vmem:[%s4] sm:$0x1]
  %v70 = vlaneseq
  %v71 = vshrl.u32 %v70, 7
  %v72 = vsub.s32 0, %v71
  %v73 = vrot.slane %v68, %v72
  %v75 = vadd.f32 %v66, %v73
  %v76 = vadd.f32 %v67, %v73
  %v77 = vpack.c.bf16 %v76, %v75
  %v78 = vld [vmem:[#allocation2] sm:$0xff]
  %v79 = vld [vmem:[#allocation2 + $0x8] sm:$0xff]
  %v80 = vld [vmem:[%s1] sm:$0xf]
  %v81 = vld [vmem:[%s1 + $0x4] sm:$0xf]
  %v82 = vld [vmem:[%s1 + $0x8] sm:$0xf]
  %v83 = vld [vmem:[%s1 + $0xc] sm:$0xf]
  %v84 = vld [vmem:[%s1 + $0x10] sm:$0xf]
  %v85 = vld [vmem:[%s1 + $0x14] sm:$0xf]
  %v86 = vld [vmem:[%s1 + $0x18] sm:$0xf]
  %v87 = vld [vmem:[%s1 + $0x1c] sm:$0xf]
  %v88 = vld [vmem:[%s1 + $0x20] sm:$0xf]
  %v89 = vld [vmem:[%s1 + $0x24] sm:$0xf]
  %v90 = vld [vmem:[%s1 + $0x28] sm:$0xf]
  %v91 = vld [vmem:[%s1 + $0x2c] sm:$0xf]
  %v92 = vld [vmem:[%s1 + $0x30] sm:$0xf]
  %v93 = vld [vmem:[%s1 + $0x34] sm:$0xf]
  %v94 = vld [vmem:[%s1 + $0x38] sm:$0xf]
  %v95 = vld [vmem:[%s1 + $0x3c] sm:$0xf]
  %v112 = vunpack.c.l.b16 %v80
  %v113 = vunpack.c.l.b16 %v81
  %v114 = vunpack.c.l.b16 %v82
  %v115 = vunpack.c.l.b16 %v83
  %v116 = vunpack.c.l.b16 %v84
  %v117 = vunpack.c.l.b16 %v85
  %v118 = vunpack.c.l.b16 %v86
  %v119 = vunpack.c.l.b16 %v87
  %v120 = vunpack.c.l.b16 %v88
  %v121 = vunpack.c.l.b16 %v89
  %v122 = vunpack.c.l.b16 %v90
  %v123 = vunpack.c.l.b16 %v91
  %v124 = vunpack.c.l.b16 %v92
  %v125 = vunpack.c.l.b16 %v93
  %v126 = vunpack.c.l.b16 %v94
  %v127 = vunpack.c.l.b16 %v95
  %v128 = vpack.c.b16 %v113, %v112
  %v129 = vpack.c.b16 %v115, %v114
  %v130 = vpack.c.b16 %v117, %v116
  %v131 = vpack.c.b16 %v119, %v118
  %v132 = vpack.c.b16 %v121, %v120
  %v133 = vpack.c.b16 %v123, %v122
  %v134 = vpack.c.b16 %v125, %v124
  %v135 = vpack.c.b16 %v127, %v126
  %144 = vmatprep.subr.bf16.mxu0 0
  %145 = vmatpush1.bf16.msra.mxu0 %v135
  %146 = vmatprep.subr.bf16.mxu0 0
  %147 = vmatpush1.bf16.msra.mxu0 %v134
  %148 = vmatprep.subr.bf16.mxu0 0
  %149 = vmatpush1.bf16.msra.mxu0 %v133
  %150 = vmatprep.subr.bf16.mxu0 0
  %151 = vmatpush1.bf16.msra.mxu0 %v132
  %152 = vmatprep.subr.bf16.mxu0 0
  %153 = vmatpush1.bf16.msra.mxu0 %v131
  %154 = vmatprep.subr.bf16.mxu0 0
  %155 = vmatpush1.bf16.msra.mxu0 %v130
  %156 = vmatprep.subr.bf16.mxu0 0
  %157 = vmatpush1.bf16.msra.mxu0 %v129
  %158 = vmatprep.subr.bf16.mxu0 0
  %159 = vmatpush1.bf16.msra.mxu0 %v128
  %160 = vmatprep.subr.bf16.mxu0 0
  %161 = vmatpush2.bf16.msra.mxu0 0
  %162 = vmatprep.subr.bf16.mxu0 0
  %163 = vmatpush2.bf16.msra.mxu0 0
  %164 = vmatprep.subr.bf16.mxu0 0
  %165 = vmatpush2.bf16.msra.mxu0 0
  %166 = vmatprep.subr.bf16.mxu0 0
  %167 = vmatpush2.bf16.msra.mxu0 0
  %168 = vmatprep.subr.bf16.mxu0 0
  %169 = vmatpush2.bf16.msra.mxu0 0
  %170 = vmatprep.subr.bf16.mxu0 0
  %171 = vmatpush2.bf16.msra.mxu0 0
  %172 = vmatprep.subr.bf16.mxu0 0
  %173 = vmatpush2.bf16.msra.mxu0 0
  %174 = vmatprep.subr.bf16.mxu0 0
  %175 = vmatpush2.bf16.msra.mxu0 0
  %176 = vmatprep.mubr.bf16.mxu0 0
  %177 = vmatmul.mubr.bf16.gmra.mxu0 %v77
  %v178 = vpop.f32.mrf.mxu0
  %v179 = vadd.f32 0.0, %v178
  %v180 = vpop.f32.mrf.mxu0
  %v181 = vpop.f32.mrf.mxu0
  %v182 = vadd.f32 0.0, %v181
  %v183 = vpop.f32.mrf.mxu0
  %184 = vdwg.mxu0
  %v185 = vadd.f32 %v78, %v179
  %v186 = vadd.f32 %v79, %v182
  %187 = vst [vmem:[#allocation2] sm:$0xff] %v185
  %188 = vst [vmem:[#allocation2 + $0x8] sm:$0xff] %v186
  // Predicated region
  $region26: #{_lambda_.23} parent=0 // pred_check
    %p189 = pneg %p21
  $region27: #{_lambda_.23} parent=0 // pred_check_branch
    %191 = sbr.rel (%p189) target = $region29
  $region28: #{_lambda_.23} parent=0 // pred_region
    %v192 = vld [vmem:[#allocation2] sm:$0xff]
    %v193 = vld [vmem:[#allocation2 + $0x8] sm:$0xff]
    %v194 = vld [vmem:[%s2] sm:$0x1]
    %v196 = vlaneseq
    %v197 = vshrl.u32 %v196, 7
    %v198 = vsub.s32 0, %v197
    %v199 = vrot.slane %v194, %v198
    %v201 = vadd.f32 %v192, %v199
    %v202 = vadd.f32 %v193, %v199
    %203 = vst [vmem:[%s5] sm:$0xff] %v201
    %204 = vst [vmem:[%s5 + $0x8] sm:$0xff] %v202
  $region29: #{_lambda_.23} parent=0 // pred_fallthru
    _
  // Predicated region
  $region30: #{_lambda_.23} parent=0 // pred_check
    _
  $region31: #{_lambda_.23} parent=0 // pred_check_branch
    %206 = sbr.rel (0) target = $region33
  $region32: #{_lambda_.23} parent=0 // pred_region
    _
  $region33: #{_lambda_.23} parent=0 // pred_fallthru
    _
  // Predicated region
  $region34: #{_lambda_.23} parent=0 // pred_check
    _
  $region35: #{_lambda_.23} parent=0 // pred_check_branch
    %208 = sbr.rel (0) target = $region37
  $region36: #{_lambda_.23} parent=0 // pred_region
    _
  $region37: #{_lambda_.23} parent=0 // pred_fallthru
    _

</llo_original>
